<compile_context>
chip_gen: v6e
topology: v6e:2x2x1
jax: 0.10.0
libtpu: 0.0.40
codegen_flags: <defaults>
</compile_context>

<pallas_src>
import jax
import jax.numpy as jnp
from jax import lax
from jax.experimental import pallas as pl
from jax.experimental.pallas import tpu as pltpu


# ------------------------------ helpers -------------------------------------

def _pad_up(n, m):
    return ((n + m - 1) // m) * m


def _block_vmem_bytes(shape, dtype):
    """Approximate VMEM footprint of one block (last dim padded to 128 lanes,
    second-last to the dtype's sublane multiple)."""
    itemsize = jnp.dtype(dtype).itemsize
    s = list(shape)
    s[-1] = _pad_up(s[-1], 128)
    if len(s) >= 2:
        s[-2] = _pad_up(s[-2], 8 * max(1, 4 // itemsize))
    tot = itemsize
    for d in s:
        tot *= d
    return tot


# ------------------------------ fused Pallas kernel ------------------------------

def _make_kernel(N, D, E, De, G, we_off):
    D2, D3, D4 = 2 * D, 3 * D, 4 * D
    f32 = jnp.float32
    bf16 = jnp.bfloat16

    def kernel(x_in_ref, ef_ref, idx_ref, tgt_row_ref, batch_ref,   # graph data / indices
               slab_ref, ro_ref,                                    # packed weights
               local_ref, global_ref,                               # outputs
               x_sc, gsrc_sc, gtgt_sc, scat_sc):                    # VMEM scratch
        l = pl.program_id(0)
        num_l = pl.num_programs(0)

        # ---- one-time init: node features + bf16 one-hot gather/scatter matrices ----
        @pl.when(l == 0)
        def _init():
            x_sc[...] = x_in_ref[...].astype(f32)
            idx = idx_ref[...]                                        # [E, 2] int32 (src|tgt)
            node_iota_en = lax.broadcasted_iota(jnp.int32, (E, N), 1)
            # bool -> f32 -> bf16: exact 0/1 values, safest lowering path.
            gsrc_sc[...] = (node_iota_en == idx[:, 0:1]).astype(f32).astype(bf16)   # [E, N]
            gtgt_sc[...] = (node_iota_en == idx[:, 1:2]).astype(f32).astype(bf16)   # [E, N]
            node_iota_ne = lax.broadcasted_iota(jnp.int32, (N, E), 0)
            # Transposed tgt one-hot built once -> per-layer scatter is a plain NN matmul.
            scat_sc[...] = (node_iota_ne == tgt_row_ref[...]).astype(f32).astype(bf16)  # [N, E]

        x = x_sc[...]                                                 # [N, D] f32
        slab = slab_ref[...]                                          # [48, 4D] f32
        wf = slab[0:D, :]                                             # [D, 4D]  (q|v|k|skip)
        bf = slab[D:D + 1, :]                                         # [1, 4D]
        we = slab[we_off:we_off + De, 0:D]                            # [De, D]  lin_edge

        # ---- fused node projections: [q | v | k | skip(+conv bias)] in one matmul ----
        proj = jnp.dot(x, wf, preferred_element_type=f32) + bf        # [N, 4D]
        qv = proj[:, 0:D2]                                            # q | v   (lane 0-aligned)
        k = proj[:, D2:D3]
        skip = proj[:, D3:D4]

        e = jnp.dot(ef_ref[...], we, preferred_element_type=f32)      # [E, D]

        # ---- per-edge gathers: bf16 x bf16 -> f32 accumulation on the MXU ----
        k_i = jnp.dot(gtgt_sc[...], k.astype(bf16), preferred_element_type=f32) + e   # [E, D]
        qv_j = jnp.dot(gsrc_sc[...], qv.astype(bf16), preferred_element_type=f32)     # [E, 2D]
        q_j = qv_j[:, 0:D] + e
        v_j = qv_j[:, D:D2] + e

        # Elementwise gate in f32 (VPU/EUP path).
        msg = jax.nn.sigmoid(k_i + q_j) * v_j                          # [E, D]

        # ---- scatter-add into targets: plain NN matmul with pre-built [N,E] one-hot ----
        agg = jnp.dot(scat_sc[...], msg.astype(bf16), preferred_element_type=f32)     # [N, D]
        x_sc[...] = agg + skip

        is_last = l == num_l - 1

        @pl.when(jnp.logical_not(is_last))
        def _relu():
            # ReLU between layers; dropout(p=0.6, training=False) is the identity.
            x_sc[...] = jnp.maximum(x_sc[...], 0.0)

        @pl.when(is_last)
        def _readout():
            eps = 1e-5
            ro = ro_ref[...]                                          # [40, D]
            wg = ro[0:D, :]
            bg = ro[D:D + 1, :]
            ng = ro[D + 1:D + 2, :]
            nb = ro[D + 2:D + 3, :]
            gg = ro[D + 3:D + 4, :]
            gb = ro[D + 4:D + 5, :]

            xf = x_sc[...]                                            # [N, D]

            # local_feature = LayerNorm(node_feature)
            mu = jnp.mean(xf, axis=-1, keepdims=True)
            xc = xf - mu
            var = jnp.mean(xc * xc, axis=-1, keepdims=True)
            local_ref[...] = xc * lax.rsqrt(var + eps) * ng + nb

            # global_mean_pool: batch one-hot built in-kernel as [G, N]
            graph_iota = lax.broadcasted_iota(jnp.int32, (G, N), 0)
            bh_t = (graph_iota == batch_ref[...]).astype(f32)         # [G, N]
            counts = jnp.sum(bh_t, axis=1, keepdims=True)             # [G, 1]
            gsum = jnp.dot(bh_t, xf, preferred_element_type=f32)      # [G, D]
            # NOTE: empty graphs yield 0 here; PyG global_mean_pool would produce NaN (0/0).
            g = gsum / jnp.maximum(counts, 1.0)

            # graph_norm(graph_linear(global_feature))
            g = jnp.dot(g, wg, preferred_element_type=f32) + bg
            mu2 = jnp.mean(g, axis=-1, keepdims=True)
            gc = g - mu2
            var2 = jnp.mean(gc * gc, axis=-1, keepdims=True)
            global_ref[...] = gc * lax.rsqrt(var2 + eps) * gg + gb

    return kernel


# ------------------------------ wrapper ------------------------------------

def graph_encoder_forward(node_feature, edge_index, edge_feature, batch,
                          layers, head, num_graphs):
    N, D = node_feature.shape
    E, De = edge_feature.shape
    L = len(layers)
    G = num_graphs
    D4 = 4 * D
    f32, bf16, i32 = jnp.float32, jnp.bfloat16, jnp.int32

    # ---- pack per-layer weights into one slab per layer (done once, off the hot path) ----
    we_off = _pad_up(D + 1, 8)                       # bias row right after the D weight rows
    slab_rows = we_off + _pad_up(De, 8)
    slabs = []
    for p in layers:
        w = jnp.concatenate([p["wq"], p["wv"], p["wk"], p["wskip"]], axis=1)       # [D, 4D]
        b = jnp.concatenate([p["bq"], p["bv"], p["bk"], p["bias"]], axis=1)        # [1, 4D]
        s = jnp.zeros((slab_rows, D4), f32)
        s = s.at[0:D, :].set(w)
        s = s.at[D:D + 1, :].set(b)
        s = s.at[we_off:we_off + De, 0:D].set(p["we"])
        slabs.append(s)
    layer_slab = jnp.stack(slabs)                                                   # [L, 48, 4D]

    # ---- pack the six readout parameter streams into one slab ----
    ro_rows = _pad_up(D + 5, 8)
    ro = jnp.zeros((ro_rows, D), f32)
    ro = ro.at[0:D, :].set(head["wg"])
    ro = ro.at[D:D + 1, :].set(head["bg"])
    ro = ro.at[D + 1:D + 2, :].set(head["node_gamma"])
    ro = ro.at[D + 2:D + 3, :].set(head["node_beta"])
    ro = ro.at[D + 3:D + 4, :].set(head["graph_gamma"])
    ro = ro.at[D + 4:D + 5, :].set(head["graph_beta"])

    # ---- index arrays (src/tgt packed into one stream; tgt also lane-major for the
    #      transposed scatter one-hot) ----
    idx_cols = jnp.stack([edge_index[0], edge_index[1]], axis=1).astype(i32)        # [E, 2]
    tgt_row = edge_index[1].astype(i32).reshape(1, E)                               # [1, E]
    batch_row = batch.astype(i32).reshape(1, N)                                     # [1, N]

    kernel = _make_kernel(N, D, E, De, G, we_off)

    in_block_shapes = [
        ((N, D), f32), ((E, De), f32), ((E, 2), i32), ((1, E), i32), ((1, N), i32),
        ((slab_rows, D4), f32), ((ro_rows, D), f32),
    ]
    out_block_shapes = [((N, D), f32), ((G, D), f32)]
    scratch_shapes = [
        pltpu.VMEM((N, D), f32),        # resident node features
        pltpu.VMEM((E, N), bf16),       # src one-hot (gather q|v)
        pltpu.VMEM((E, N), bf16),       # tgt one-hot (gather k)
        pltpu.VMEM((N, E), bf16),       # transposed tgt one-hot (scatter-add)
    ]

    # ---- VMEM budget derived from the actual footprint, capped at the chip's capacity ----
    need = (2 * sum(_block_vmem_bytes(s, d) for s, d in in_block_shapes)
            + 2 * sum(_block_vmem_bytes(s, d) for s, d in out_block_shapes)
            + _block_vmem_bytes((N, D), f32)
            + 2 * _block_vmem_bytes((E, N), bf16)
            + _block_vmem_bytes((N, E), bf16)
            + (4 << 20))                                   # compiler-internal headroom
    try:
        cap = int(pltpu.get_tpu_info().vmem_capacity_bytes * 0.85)
    except Exception:
        cap = 56 * 1024 * 1024                             # v7x-safe fallback (64 MiB chip)
    vmem_limit = int(min(max(need, 16 << 20), cap))

    # ---- advisory cost estimate for the XLA scheduler ----
    flops = L * (2 * N * D * D4 + 2 * E * De * D + 6 * E * N * D) \
        + 2 * G * N * D + 2 * G * D * D
    bytes_accessed = int(node_feature.nbytes + edge_feature.nbytes + idx_cols.nbytes
                         + tgt_row.nbytes + batch_row.nbytes + layer_slab.nbytes + ro.nbytes
                         + N * D * 4 + G * D * 4)
    cost = pl.CostEstimate(flops=int(flops), transcendentals=int(L * E * D),
                           bytes_accessed=bytes_accessed)

    grid_spec = pltpu.PrefetchScalarGridSpec(
        num_scalar_prefetch=0,
        grid=(L,),
        in_specs=[
            pl.BlockSpec((N, D), lambda l: (0, 0)),                    # node_feature (step 0)
            pl.BlockSpec((E, De), lambda l: (0, 0)),                   # edge_feature
            pl.BlockSpec((E, 2), lambda l: (0, 0)),                    # [src | tgt] indices
            pl.BlockSpec((1, E), lambda l: (0, 0)),                    # tgt (lane-major)
            pl.BlockSpec((1, N), lambda l: (0, 0)),                    # batch (lane-major)
            pl.BlockSpec((None, slab_rows, D4), lambda l: (l, 0, 0)),  # per-layer weight slab
            pl.BlockSpec((ro_rows, D), lambda l: (0, 0)),              # readout param slab
        ],
        out_specs=(
            pl.BlockSpec((N, D), lambda l: (0, 0)),                    # local_feature
            pl.BlockSpec((G, D), lambda l: (0, 0)),                    # global_feature
        ),
        scratch_shapes=scratch_shapes,
    )

    local, global_ = pl.pallas_call(
        kernel,
        out_shape=(jax.ShapeDtypeStruct((N, D), f32),
                   jax.ShapeDtypeStruct((G, D), f32)),
        grid_spec=grid_spec,
        compiler_params=pltpu.CompilerParams(
            dimension_semantics=("arbitrary",),        # layers are sequentially dependent
            vmem_limit_bytes=vmem_limit,
        ),
        cost_estimate=cost,
    )(node_feature.astype(f32), edge_feature.astype(f32),
      idx_cols, tgt_row, batch_row, layer_slab, ro)
    return local, global_


# ------------------------------ parameters ----------------------------------

def init_params(key, node_dim, edge_dim, num_layers):
    D, De = node_dim, edge_dim
    ks = iter(jax.random.split(key, num_layers * 9 + 2))

    def nrm(k, shape, scale=0.1):
        return scale * jax.random.normal(k, shape, jnp.float32)

    layers = []
    for _ in range(num_layers):
        layers.append(dict(
            wk=nrm(next(ks), (D, D)),   bk=nrm(next(ks), (1, D)),
            wq=nrm(next(ks), (D, D)),   bq=nrm(next(ks), (1, D)),
            wv=nrm(next(ks), (D, D)),   bv=nrm(next(ks), (1, D)),
            we=nrm(next(ks), (De, D)),                     # lin_edge, no bias
            wskip=nrm(next(ks), (D, D)),                   # lin_skip, no bias
            bias=nrm(next(ks), (1, D)),                    # conv bias
        ))
    head = dict(
        wg=nrm(next(ks), (D, D)), bg=nrm(next(ks), (1, D)),
        node_gamma=jnp.ones((1, D), jnp.float32), node_beta=jnp.zeros((1, D), jnp.float32),
        graph_gamma=jnp.ones((1, D), jnp.float32), graph_beta=jnp.zeros((1, D), jnp.float32),
    )
    return layers, head


# ------------------------------ pure-JAX reference (f32 module semantics) ---------------------------

def reference_forward(node_feature, edge_index, edge_feature, batch,
                      layers, head, num_graphs):
    x = node_feature.astype(jnp.float32)
    src, tgt = edge_index[0], edge_index[1]
    for i, p in enumerate(layers):
        k = x @ p["wk"] + p["bk"]
        q = x @ p["wq"] + p["bq"]
        v = x @ p["wv"] + p["bv"]
        e = edge_feature @ p["we"]
        msg = jax.nn.sigmoid(k[tgt] + e + q[src] + e) * (v[src] + e)
        agg = jax.ops.segment_sum(msg, tgt, num_segments=x.shape[0])
        x = agg + x @ p["wskip"] + p["bias"]
        if i < len(layers) - 1:
            x = jax.nn.relu(x)

    def ln(z, g, b):
        mu = jnp.mean(z, -1, keepdims=True)
        var = jnp.mean((z - mu) ** 2, -1, keepdims=True)
        return (z - mu) / jnp.sqrt(var + 1e-5) * g + b

    local = ln(x, head["node_gamma"], head["node_beta"])
    gsum = jax.ops.segment_sum(x, batch, num_segments=num_graphs)
    cnt = jax.ops.segment_sum(jnp.ones((x.shape[0], 1), jnp.float32), batch,
                              num_segments=num_graphs)
    g = (gsum / cnt) @ head["wg"] + head["bg"]
    return local, ln(g, head["graph_gamma"], head["graph_beta"])


# ------------------------------ main -----------------------------------------

if __name__ == "__main__":
    node_dim, edge_dim, num_layers = 32, 8, 2
    N, E, num_graphs = 16, 32, 2

    key = jax.random.PRNGKey(0)
    k_x, k_e, k_s, k_t, k_p = jax.random.split(key, 5)

    node_feature = jax.random.normal(k_x, (N, node_dim), jnp.float32)
    edge_feature = jax.random.normal(k_e, (E, edge_dim), jnp.float32)
    src = jax.random.randint(k_s, (E,), 0, N, jnp.int32)
    tgt = jax.random.randint(k_t, (E,), 0, N, jnp.int32)
    edge_index = jnp.stack([src, tgt], axis=0)                         # [2, E]
    batch = jnp.concatenate([jnp.zeros(N // 2, jnp.int32),
                             jnp.ones(N - N // 2, jnp.int32)])         # [N]

    layers, head = init_params(k_p, node_dim, edge_dim, num_layers)

    local, global_ = graph_encoder_forward(node_feature, edge_index, edge_feature,
                                           batch, layers, head, num_graphs)
    jax.block_until_ready((local, global_))

    ref_local, ref_global = reference_forward(node_feature, edge_index, edge_feature,
                                              batch, layers, head, num_graphs)
    assert local.shape == (N, node_dim) and global_.shape == (num_graphs, node_dim)
    # Tolerance reflects the bf16 MXU gather/scatter path (per perf review): gathered
    # k/q/v and msg values are rounded to bf16 (~2e-3 relative) before f32 accumulation.
    assert jnp.allclose(local, ref_local, atol=3e-2, rtol=3e-2)
    assert jnp.allclose(global_, ref_global, atol=3e-2, rtol=3e-2)

    print("KERNEL_OK")
</pallas_src>

<mosaic_0001>
module attributes {stable_mosaic.version = 11 : i64} {
  func.func @kernel(%arg0: i32, %arg1: memref<16x32xf32, #tpu.memory_space<vmem>>, %arg2: memref<32x8xf32, #tpu.memory_space<vmem>>, %arg3: memref<32x2xi32, #tpu.memory_space<vmem>>, %arg4: memref<1x32xi32, #tpu.memory_space<vmem>>, %arg5: memref<1x16xi32, #tpu.memory_space<vmem>>, %arg6: memref<1x48x128xf32, #tpu.memory_space<vmem>>, %arg7: memref<40x32xf32, #tpu.memory_space<vmem>>, %arg8: memref<16x32xf32, #tpu.memory_space<vmem>>, %arg9: memref<2x32xf32, #tpu.memory_space<vmem>>, %arg10: memref<16x32xf32, #tpu.memory_space<vmem>>, %arg11: memref<32x16xbf16, #tpu.memory_space<vmem>>, %arg12: memref<32x16xbf16, #tpu.memory_space<vmem>>, %arg13: memref<16x32xbf16, #tpu.memory_space<vmem>>) attributes {dimension_semantics = [#tpu.dimension_semantics<arbitrary>], iteration_bounds = array<i64: 2>, scalar_prefetch = 0 : i64, scratch_operands = 4 : i64, tpu.core_type = #tpu.core_type<tc>, window_params = [{pipeline_mode = #tpu.pipeline_mode<synchronous>, transform_indices = @transform_0, window_bounds = array<i64: 16, 32>}, {pipeline_mode = #tpu.pipeline_mode<synchronous>, transform_indices = @transform_1, window_bounds = array<i64: 32, 8>}, {pipeline_mode = #tpu.pipeline_mode<synchronous>, transform_indices = @transform_2, window_bounds = array<i64: 32, 2>}, {pipeline_mode = #tpu.pipeline_mode<synchronous>, transform_indices = @transform_3, window_bounds = array<i64: 1, 32>}, {pipeline_mode = #tpu.pipeline_mode<synchronous>, transform_indices = @transform_4, window_bounds = array<i64: 1, 16>}, {transform_indices = @transform_5, window_bounds = array<i64: 1, 48, 128>}, {pipeline_mode = #tpu.pipeline_mode<synchronous>, transform_indices = @transform_6, window_bounds = array<i64: 40, 32>}, {pipeline_mode = #tpu.pipeline_mode<synchronous>, transform_indices = @transform_7, window_bounds = array<i64: 16, 32>}, {pipeline_mode = #tpu.pipeline_mode<synchronous>, transform_indices = @transform_8, window_bounds = array<i64: 2, 32>}]} {
    %c0_i32 = arith.constant 0 : i32
    %0 = arith.cmpi eq, %arg0, %c0_i32 : i32
    %1 = arith.extui %0 : i1 to i32
    %c0_i32_0 = arith.constant 0 : i32
    %2 = arith.cmpi ne, %1, %c0_i32_0 : i32
    scf.if %2 {
      %c0_22 = arith.constant 0 : index
      %c0_23 = arith.constant 0 : index
      %46 = vector.load %arg1[%c0_22, %c0_23] : memref<16x32xf32, #tpu.memory_space<vmem>>, vector<16x32xf32>
      %c0_24 = arith.constant 0 : index
      %c0_25 = arith.constant 0 : index
      %47 = vector.load %arg10[%c0_24, %c0_25] : memref<16x32xf32, #tpu.memory_space<vmem>>, vector<16x32xf32>
      tpu.vector_store %arg10[%c0_24, %c0_25], %46 {strides = array<i32>} : memref<16x32xf32, #tpu.memory_space<vmem>>, vector<16x32xf32>,
      %c0_26 = arith.constant 0 : index
      %c0_27 = arith.constant 0 : index
      %48 = vector.load %arg3[%c0_26, %c0_27] : memref<32x2xi32, #tpu.memory_space<vmem>>, vector<32x2xi32>
      %49 = tpu.iota {dimensions = array<i32: 1>} : vector<32x16xi32>
      %50 = vector.extract_strided_slice %48 {offsets = [0, 0], sizes = [32, 1], strides = [1, 1]} : vector<32x2xi32> to vector<32x1xi32>
      %51 = vector.broadcast %50 : vector<32x1xi32> to vector<32x16xi32>
      %52 = arith.cmpi eq, %49, %51 : vector<32x16xi32>
      %53 = arith.extui %52 : vector<32x16xi1> to vector<32x16xi32>
      %54 = arith.sitofp %53 : vector<32x16xi32> to vector<32x16xf32>
      %55 = arith.truncf %54 : vector<32x16xf32> to vector<32x16xbf16>
      %c0_28 = arith.constant 0 : index
      %c0_29 = arith.constant 0 : index
      %56 = vector.load %arg11[%c0_28, %c0_29] : memref<32x16xbf16, #tpu.memory_space<vmem>>, vector<32x16xbf16>
      tpu.vector_store %arg11[%c0_28, %c0_29], %55 {strides = array<i32>} : memref<32x16xbf16, #tpu.memory_space<vmem>>, vector<32x16xbf16>,
      %57 = vector.extract_strided_slice %48 {offsets = [0, 1], sizes = [32, 1], strides = [1, 1]} : vector<32x2xi32> to vector<32x1xi32>
      %58 = vector.broadcast %57 : vector<32x1xi32> to vector<32x16xi32>
      %59 = arith.cmpi eq, %49, %58 : vector<32x16xi32>
      %60 = arith.extui %59 : vector<32x16xi1> to vector<32x16xi32>
      %61 = arith.sitofp %60 : vector<32x16xi32> to vector<32x16xf32>
      %62 = arith.truncf %61 : vector<32x16xf32> to vector<32x16xbf16>
      %c0_30 = arith.constant 0 : index
      %c0_31 = arith.constant 0 : index
      %63 = vector.load %arg12[%c0_30, %c0_31] : memref<32x16xbf16, #tpu.memory_space<vmem>>, vector<32x16xbf16>
      tpu.vector_store %arg12[%c0_30, %c0_31], %62 {strides = array<i32>} : memref<32x16xbf16, #tpu.memory_space<vmem>>, vector<32x16xbf16>,
      %64 = tpu.iota {dimensions = array<i32: 0>} : vector<16x32xi32>
      %c0_32 = arith.constant 0 : index
      %c0_33 = arith.constant 0 : index
      %65 = vector.load %arg4[%c0_32, %c0_33] : memref<1x32xi32, #tpu.memory_space<vmem>>, vector<1x32xi32>
      %66 = vector.broadcast %65 : vector<1x32xi32> to vector<16x32xi32>
      %67 = arith.cmpi eq, %64, %66 : vector<16x32xi32>
      %68 = arith.extui %67 : vector<16x32xi1> to vector<16x32xi32>
      %69 = arith.sitofp %68 : vector<16x32xi32> to vector<16x32xf32>
      %70 = arith.truncf %69 : vector<16x32xf32> to vector<16x32xbf16>
      %c0_34 = arith.constant 0 : index
      %c0_35 = arith.constant 0 : index
      %71 = vector.load %arg13[%c0_34, %c0_35] : memref<16x32xbf16, #tpu.memory_space<vmem>>, vector<16x32xbf16>
      tpu.vector_store %arg13[%c0_34, %c0_35], %70 {strides = array<i32>} : memref<16x32xbf16, #tpu.memory_space<vmem>>, vector<16x32xbf16>,
    } else {
    }
    %c0 = arith.constant 0 : index
    %c0_1 = arith.constant 0 : index
    %3 = vector.load %arg10[%c0, %c0_1] : memref<16x32xf32, #tpu.memory_space<vmem>>, vector<16x32xf32>
    %c0_2 = arith.constant 0 : index
    %c0_3 = arith.constant 0 : index
    %c0_4 = arith.constant 0 : index
    %4 = vector.load %arg6[%c0_2, %c0_3, %c0_4] : memref<1x48x128xf32, #tpu.memory_space<vmem>>, vector<1x48x128xf32>
    %5 = vector.shape_cast %4 : vector<1x48x128xf32> to vector<48x128xf32>
    %6 = vector.extract_strided_slice %5 {offsets = [0, 0], sizes = [32, 128], strides = [1, 1]} : vector<48x128xf32> to vector<32x128xf32>
    %7 = vector.extract_strided_slice %5 {offsets = [32, 0], sizes = [1, 128], strides = [1, 1]} : vector<48x128xf32> to vector<1x128xf32>
    %8 = vector.extract_strided_slice %5 {offsets = [40, 0], sizes = [8, 32], strides = [1, 1]} : vector<48x128xf32> to vector<8x32xf32>
    %cst = arith.constant dense<0.000000e+00> : vector<16x128xf32>
    %9 = tpu.matmul %3, %6, %cst {dimension_numbers = #tpu.dot_dimension_numbers<[1], [0], [0], [1], [0, 0, 1, 1], [], []>} : vector<16x32xf32>, vector<32x128xf32>, vector<16x128xf32> -> vector<16x128xf32>
    %10 = vector.broadcast %7 : vector<1x128xf32> to vector<16x128xf32>
    %11 = arith.addf %9, %10 : vector<16x128xf32>
    %12 = vector.extract_strided_slice %11 {offsets = [0, 0], sizes = [16, 64], strides = [1, 1]} : vector<16x128xf32> to vector<16x64xf32>
    %13 = vector.extract_strided_slice %11 {offsets = [0, 64], sizes = [16, 32], strides = [1, 1]} : vector<16x128xf32> to vector<16x32xf32>
    %14 = vector.extract_strided_slice %11 {offsets = [0, 96], sizes = [16, 32], strides = [1, 1]} : vector<16x128xf32> to vector<16x32xf32>
    %c0_5 = arith.constant 0 : index
    %c0_6 = arith.constant 0 : index
    %15 = vector.load %arg2[%c0_5, %c0_6] : memref<32x8xf32, #tpu.memory_space<vmem>>, vector<32x8xf32>
    %cst_7 = arith.constant dense<0.000000e+00> : vector<32x32xf32>
    %16 = tpu.matmul %15, %8, %cst_7 {dimension_numbers = #tpu.dot_dimension_numbers<[1], [0], [0], [1], [0, 0, 1, 1], [], []>} : vector<32x8xf32>, vector<8x32xf32>, vector<32x32xf32> -> vector<32x32xf32>
    %c0_8 = arith.constant 0 : index
    %c0_9 = arith.constant 0 : index
    %17 = vector.load %arg12[%c0_8, %c0_9] : memref<32x16xbf16, #tpu.memory_space<vmem>>, vector<32x16xbf16>
    %18 = arith.truncf %13 : vector<16x32xf32> to vector<16x32xbf16>
    %cst_10 = arith.constant dense<0.000000e+00> : vector<32x32xf32>
    %19 = tpu.matmul %17, %18, %cst_10 {dimension_numbers = #tpu.dot_dimension_numbers<[1], [0], [0], [1], [0, 0, 1, 1], [], []>} : vector<32x16xbf16>, vector<16x32xbf16>, vector<32x32xf32> -> vector<32x32xf32>
    %20 = arith.addf %19, %16 : vector<32x32xf32>
    %c0_11 = arith.constant 0 : index
    %c0_12 = arith.constant 0 : index
    %21 = vector.load %arg11[%c0_11, %c0_12] : memref<32x16xbf16, #tpu.memory_space<vmem>>, vector<32x16xbf16>
    %22 = arith.truncf %12 : vector<16x64xf32> to vector<16x64xbf16>
    %cst_13 = arith.constant dense<0.000000e+00> : vector<32x64xf32>
    %23 = tpu.matmul %21, %22, %cst_13 {dimension_numbers = #tpu.dot_dimension_numbers<[1], [0], [0], [1], [0, 0, 1, 1], [], []>} : vector<32x16xbf16>, vector<16x64xbf16>, vector<32x64xf32> -> vector<32x64xf32>
    %24 = vector.extract_strided_slice %23 {offsets = [0, 0], sizes = [32, 32], strides = [1, 1]} : vector<32x64xf32> to vector<32x32xf32>
    %25 = arith.addf %24, %16 : vector<32x32xf32>
    %26 = vector.extract_strided_slice %23 {offsets = [0, 32], sizes = [32, 32], strides = [1, 1]} : vector<32x64xf32> to vector<32x32xf32>
    %27 = arith.addf %26, %16 : vector<32x32xf32>
    %28 = arith.addf %20, %25 : vector<32x32xf32>
    %29 = arith.negf %28 : vector<32x32xf32>
    %30 = math.exp %29 : vector<32x32xf32>
    %cst_14 = arith.constant 1.000000e+00 : f32
    %31 = vector.broadcast %cst_14 : f32 to vector<32x32xf32>
    %32 = arith.addf %31, %30 : vector<32x32xf32>
    %33 = arith.divf %31, %32 : vector<32x32xf32>
    %34 = arith.mulf %33, %27 : vector<32x32xf32>
    %c0_15 = arith.constant 0 : index
    %c0_16 = arith.constant 0 : index
    %35 = vector.load %arg13[%c0_15, %c0_16] : memref<16x32xbf16, #tpu.memory_space<vmem>>, vector<16x32xbf16>
    %36 = arith.truncf %34 : vector<32x32xf32> to vector<32x32xbf16>
    %cst_17 = arith.constant dense<0.000000e+00> : vector<16x32xf32>
    %37 = tpu.matmul %35, %36, %cst_17 {dimension_numbers = #tpu.dot_dimension_numbers<[1], [0], [0], [1], [0, 0, 1, 1], [], []>} : vector<16x32xbf16>, vector<32x32xbf16>, vector<16x32xf32> -> vector<16x32xf32>
    %38 = arith.addf %37, %14 : vector<16x32xf32>
    %c0_18 = arith.constant 0 : index
    %c0_19 = arith.constant 0 : index
    %39 = vector.load %arg10[%c0_18, %c0_19] : memref<16x32xf32, #tpu.memory_space<vmem>>, vector<16x32xf32>
    tpu.vector_store %arg10[%c0_18, %c0_19], %38 {strides = array<i32>} : memref<16x32xf32, #tpu.memory_space<vmem>>, vector<16x32xf32>,
    %c1_i32 = arith.constant 1 : i32
    %40 = arith.cmpi eq, %arg0, %c1_i32 : i32
    %true = arith.constant true
    %41 = arith.xori %40, %true : i1
    %42 = arith.extui %41 : i1 to i32
    %c0_i32_20 = arith.constant 0 : i32
    %43 = arith.cmpi ne, %42, %c0_i32_20 : i32
    scf.if %43 {
      %c0_22 = arith.constant 0 : index
      %c0_23 = arith.constant 0 : index
      %46 = vector.load %arg10[%c0_22, %c0_23] : memref<16x32xf32, #tpu.memory_space<vmem>>, vector<16x32xf32>
      %cst_24 = arith.constant 0.000000e+00 : f32
      %47 = vector.broadcast %cst_24 : f32 to vector<16x32xf32>
      %48 = arith.maximumf %46, %47 : vector<16x32xf32>
      %c0_25 = arith.constant 0 : index
      %c0_26 = arith.constant 0 : index
      %49 = vector.load %arg10[%c0_25, %c0_26] : memref<16x32xf32, #tpu.memory_space<vmem>>, vector<16x32xf32>
      tpu.vector_store %arg10[%c0_25, %c0_26], %48 {strides = array<i32>} : memref<16x32xf32, #tpu.memory_space<vmem>>, vector<16x32xf32>,
    } else {
    }
    %44 = arith.extui %40 : i1 to i32
    %c0_i32_21 = arith.constant 0 : i32
    %45 = arith.cmpi ne, %44, %c0_i32_21 : i32
    scf.if %45 {
      %c0_22 = arith.constant 0 : index
      %c0_23 = arith.constant 0 : index
      %46 = vector.load %arg7[%c0_22, %c0_23] : memref<40x32xf32, #tpu.memory_space<vmem>>, vector<40x32xf32>
      %47 = vector.extract_strided_slice %46 {offsets = [0, 0], sizes = [32, 32], strides = [1, 1]} : vector<40x32xf32> to vector<32x32xf32>
      %48 = vector.extract_strided_slice %46 {offsets = [32, 0], sizes = [1, 32], strides = [1, 1]} : vector<40x32xf32> to vector<1x32xf32>
      %49 = vector.extract_strided_slice %46 {offsets = [33, 0], sizes = [1, 32], strides = [1, 1]} : vector<40x32xf32> to vector<1x32xf32>
      %50 = vector.extract_strided_slice %46 {offsets = [34, 0], sizes = [1, 32], strides = [1, 1]} : vector<40x32xf32> to vector<1x32xf32>
      %51 = vector.extract_strided_slice %46 {offsets = [35, 0], sizes = [1, 32], strides = [1, 1]} : vector<40x32xf32> to vector<1x32xf32>
      %52 = vector.extract_strided_slice %46 {offsets = [36, 0], sizes = [1, 32], strides = [1, 1]} : vector<40x32xf32> to vector<1x32xf32>
      %c0_24 = arith.constant 0 : index
      %c0_25 = arith.constant 0 : index
      %53 = vector.load %arg10[%c0_24, %c0_25] : memref<16x32xf32, #tpu.memory_space<vmem>>, vector<16x32xf32>
      %cst_26 = arith.constant dense<0.000000e+00> : vector<16xf32>
      %54 = vector.multi_reduction <add>, %53, %cst_26 [1] : vector<16x32xf32> to vector<16xf32>
      %55 = vector.shape_cast %54 : vector<16xf32> to vector<16x1xf32>
      %cst_27 = arith.constant 3.200000e+01 : f32
      %56 = vector.broadcast %cst_27 : f32 to vector<16x1xf32>
      %57 = arith.divf %55, %56 : vector<16x1xf32>
      %58 = vector.broadcast %57 : vector<16x1xf32> to vector<16x32xf32>
      %59 = arith.subf %53, %58 : vector<16x32xf32>
      %60 = arith.mulf %59, %59 : vector<16x32xf32>
      %cst_28 = arith.constant dense<0.000000e+00> : vector<16xf32>
      %61 = vector.multi_reduction <add>, %60, %cst_28 [1] : vector<16x32xf32> to vector<16xf32>
      %62 = vector.shape_cast %61 : vector<16xf32> to vector<16x1xf32>
      %cst_29 = arith.constant 3.200000e+01 : f32
      %63 = vector.broadcast %cst_29 : f32 to vector<16x1xf32>
      %64 = arith.divf %62, %63 : vector<16x1xf32>
      %cst_30 = arith.constant 9.99999974E-6 : f32
      %65 = vector.broadcast %cst_30 : f32 to vector<16x1xf32>
      %66 = arith.addf %64, %65 : vector<16x1xf32>
      %67 = math.rsqrt %66 : vector<16x1xf32>
      %68 = vector.broadcast %67 : vector<16x1xf32> to vector<16x32xf32>
      %69 = arith.mulf %59, %68 : vector<16x32xf32>
      %70 = vector.broadcast %49 : vector<1x32xf32> to vector<16x32xf32>
      %71 = arith.mulf %69, %70 : vector<16x32xf32>
      %72 = vector.broadcast %50 : vector<1x32xf32> to vector<16x32xf32>
      %73 = arith.addf %71, %72 : vector<16x32xf32>
      %c0_31 = arith.constant 0 : index
      %c0_32 = arith.constant 0 : index
      %74 = vector.load %arg8[%c0_31, %c0_32] : memref<16x32xf32, #tpu.memory_space<vmem>>, vector<16x32xf32>
      tpu.vector_store %arg8[%c0_31, %c0_32], %73 {strides = array<i32>} : memref<16x32xf32, #tpu.memory_space<vmem>>, vector<16x32xf32>,
      %75 = tpu.iota {dimensions = array<i32: 0>} : vector<2x16xi32>
      %c0_33 = arith.constant 0 : index
      %c0_34 = arith.constant 0 : index
      %76 = vector.load %arg5[%c0_33, %c0_34] : memref<1x16xi32, #tpu.memory_space<vmem>>, vector<1x16xi32>
      %77 = vector.broadcast %76 : vector<1x16xi32> to vector<2x16xi32>
      %78 = arith.cmpi eq, %75, %77 : vector<2x16xi32>
      %79 = arith.extui %78 : vector<2x16xi1> to vector<2x16xi32>
      %80 = arith.sitofp %79 : vector<2x16xi32> to vector<2x16xf32>
      %cst_35 = arith.constant dense<0.000000e+00> : vector<2xf32>
      %81 = vector.multi_reduction <add>, %80, %cst_35 [1] : vector<2x16xf32> to vector<2xf32>
      %82 = vector.shape_cast %81 : vector<2xf32> to vector<2x1xf32>
      %cst_36 = arith.constant dense<0.000000e+00> : vector<2x32xf32>
      %83 = tpu.matmul %80, %53, %cst_36 {dimension_numbers = #tpu.dot_dimension_numbers<[1], [0], [0], [1], [0, 0, 1, 1], [], []>} : vector<2x16xf32>, vector<16x32xf32>, vector<2x32xf32> -> vector<2x32xf32>
      %cst_37 = arith.constant 1.000000e+00 : f32
      %84 = vector.broadcast %cst_37 : f32 to vector<2x1xf32>
      %85 = arith.maximumf %82, %84 : vector<2x1xf32>
      %86 = vector.broadcast %85 : vector<2x1xf32> to vector<2x32xf32>
      %87 = arith.divf %83, %86 : vector<2x32xf32>
      %cst_38 = arith.constant dense<0.000000e+00> : vector<2x32xf32>
      %88 = tpu.matmul %87, %47, %cst_38 {dimension_numbers = #tpu.dot_dimension_numbers<[1], [0], [0], [1], [0, 0, 1, 1], [], []>} : vector<2x32xf32>, vector<32x32xf32>, vector<2x32xf32> -> vector<2x32xf32>
      %89 = vector.broadcast %48 : vector<1x32xf32> to vector<2x32xf32>
      %90 = arith.addf %88, %89 : vector<2x32xf32>
      %cst_39 = arith.constant dense<0.000000e+00> : vector<2xf32>
      %91 = vector.multi_reduction <add>, %90, %cst_39 [1] : vector<2x32xf32> to vector<2xf32>
      %92 = vector.shape_cast %91 : vector<2xf32> to vector<2x1xf32>
      %cst_40 = arith.constant 3.200000e+01 : f32
      %93 = vector.broadcast %cst_40 : f32 to vector<2x1xf32>
      %94 = arith.divf %92, %93 : vector<2x1xf32>
      %95 = vector.broadcast %94 : vector<2x1xf32> to vector<2x32xf32>
      %96 = arith.subf %90, %95 : vector<2x32xf32>
      %97 = arith.mulf %96, %96 : vector<2x32xf32>
      %cst_41 = arith.constant dense<0.000000e+00> : vector<2xf32>
      %98 = vector.multi_reduction <add>, %97, %cst_41 [1] : vector<2x32xf32> to vector<2xf32>
      %99 = vector.shape_cast %98 : vector<2xf32> to vector<2x1xf32>
      %cst_42 = arith.constant 3.200000e+01 : f32
      %100 = vector.broadcast %cst_42 : f32 to vector<2x1xf32>
      %101 = arith.divf %99, %100 : vector<2x1xf32>
      %cst_43 = arith.constant 9.99999974E-6 : f32
      %102 = vector.broadcast %cst_43 : f32 to vector<2x1xf32>
      %103 = arith.addf %101, %102 : vector<2x1xf32>
      %104 = math.rsqrt %103 : vector<2x1xf32>
      %105 = vector.broadcast %104 : vector<2x1xf32> to vector<2x32xf32>
      %106 = arith.mulf %96, %105 : vector<2x32xf32>
      %107 = vector.broadcast %51 : vector<1x32xf32> to vector<2x32xf32>
      %108 = arith.mulf %106, %107 : vector<2x32xf32>
      %109 = vector.broadcast %52 : vector<1x32xf32> to vector<2x32xf32>
      %110 = arith.addf %108, %109 : vector<2x32xf32>
      %c0_44 = arith.constant 0 : index
      %c0_45 = arith.constant 0 : index
      %111 = vector.load %arg9[%c0_44, %c0_45] : memref<2x32xf32, #tpu.memory_space<vmem>>, vector<2x32xf32>
      tpu.vector_store %arg9[%c0_44, %c0_45], %110 {strides = array<i32>} : memref<2x32xf32, #tpu.memory_space<vmem>>, vector<2x32xf32>,
    } else {
    }
    return
  }
  func.func @transform_0(%arg0: i32) -> (i32, i32) {
    %c0_i32 = arith.constant 0 : i32
    %c0_i32_0 = arith.constant 0 : i32
    %c0_i32_1 = arith.constant 0 : i32
    return %c0_i32, %c0_i32_0 : i32, i32
  }
  func.func @transform_1(%arg0: i32) -> (i32, i32) {
    %c0_i32 = arith.constant 0 : i32
    %c0_i32_0 = arith.constant 0 : i32
    %c0_i32_1 = arith.constant 0 : i32
    return %c0_i32, %c0_i32_0 : i32, i32
  }
  func.func @transform_2(%arg0: i32) -> (i32, i32) {
    %c0_i32 = arith.constant 0 : i32
    %c0_i32_0 = arith.constant 0 : i32
    %c0_i32_1 = arith.constant 0 : i32
    return %c0_i32, %c0_i32_0 : i32, i32
  }
  func.func @transform_3(%arg0: i32) -> (i32, i32) {
    %c0_i32 = arith.constant 0 : i32
    %c0_i32_0 = arith.constant 0 : i32
    %c0_i32_1 = arith.constant 0 : i32
    return %c0_i32, %c0_i32_0 : i32, i32
  }
  func.func @transform_4(%arg0: i32) -> (i32, i32) {
    %c0_i32 = arith.constant 0 : i32
    %c0_i32_0 = arith.constant 0 : i32
    %c0_i32_1 = arith.constant 0 : i32
    return %c0_i32, %c0_i32_0 : i32, i32
  }
  func.func @transform_5(%arg0: i32) -> (i32, i32, i32) {
    %c0_i32 = arith.constant 0 : i32
    %c0_i32_0 = arith.constant 0 : i32
    %c0_i32_1 = arith.constant 0 : i32
    return %arg0, %c0_i32, %c0_i32_0 : i32, i32, i32
  }
  func.func @transform_6(%arg0: i32) -> (i32, i32) {
    %c0_i32 = arith.constant 0 : i32
    %c0_i32_0 = arith.constant 0 : i32
    %c0_i32_1 = arith.constant 0 : i32
    return %c0_i32, %c0_i32_0 : i32, i32
  }
  func.func @transform_7(%arg0: i32) -> (i32, i32) {
    %c0_i32 = arith.constant 0 : i32
    %c0_i32_0 = arith.constant 0 : i32
    %c0_i32_1 = arith.constant 0 : i32
    return %c0_i32, %c0_i32_0 : i32, i32
  }
  func.func @transform_8(%arg0: i32) -> (i32, i32) {
    %c0_i32 = arith.constant 0 : i32
    %c0_i32_0 = arith.constant 0 : i32
    %c0_i32_1 = arith.constant 0 : i32
    return %c0_i32, %c0_i32_0 : i32, i32
  }
}

</mosaic_0001>

<llo_original>
// kernel: tpu_custom_call.1
$region0: #{tpu_custom_call.1}
  #allocation0 [shape = 'u32[]', space=smem, size = 0x4, offset = 0x4, fixed_abs, tag = 'smem constant byte address 0x4 - core index']
  #allocation1 [shape = 'u32[144,128]{1,0:T(1,128)}', space=vmem, size = 0x12000, scoped, tag = 'internal scratch']
  #allocation2 [shape = 'f32[16,32]{1,0:T(8,128)}', space=vmem, size = 0x2000, scoped, tag = 'scratch operand']
  #allocation3 [shape = 'bf16[32,16]{1,0:T(8,128)(2,1)}', space=vmem, size = 0x2000, scoped, tag = 'scratch operand']
  #allocation4 [shape = 'bf16[32,16]{1,0:T(8,128)(2,1)}', space=vmem, size = 0x2000, scoped, tag = 'scratch operand']
  #allocation5 [shape = 'bf16[16,32]{1,0:T(8,128)(2,1)}', space=vmem, size = 0x1000, scoped, tag = 'scratch operand']
  %s0 = inlined_call_operand.vmem [shape: f32[16,32], index: 0, kind: input, shape index: {}]
  %s1 = inlined_call_operand.vmem [shape: f32[32,8], index: 1, kind: input, shape index: {}]
  %s2 = inlined_call_operand.vmem [shape: s32[32,2], index: 2, kind: input, shape index: {}]
  %s3 = inlined_call_operand.vmem [shape: s32[1,32], index: 3, kind: input, shape index: {}]
  %s4 = inlined_call_operand.vmem [shape: s32[1,16], index: 4, kind: input, shape index: {}]
  %s5 = inlined_call_operand.vmem [shape: f32[2,48,128], index: 5, kind: input, shape index: {}]
  %s6 = inlined_call_operand.vmem [shape: f32[40,32], index: 6, kind: input, shape index: {}]
  %s7 = inlined_call_operand.hbm [shape: f32[16,32], index: 7, kind: output, shape index: {0}]
  %s8 = inlined_call_operand.hbm [shape: f32[2,32], index: 8, kind: output, shape index: {1}]
  %9 = xla_tuple %s7, %s8
  %s10 = sld [smem:[#allocation0]]
  $region81: #{tpu_custom_call.1} parent=0
    _
  %s12 = ssub.s32 1, %s10
  %s13 = scalar_select 0, %s12, %s10
  $region1: #{tpu_custom_call.1} parent=0
    #allocation6 [shape = 'u8[8192]{0}', space=vmem, size = 0x2000, scoped, tag = 'output window, operand 0, single buffered']
    #allocation7 [shape = 's32[2]{0}', space=sflag, size = 0x8, scoped, tag = 'scoped memory for tpu_custom_call.1']
    #allocation8 [shape = 'u8[1024]{0}', space=vmem, size = 0x400, scoped, tag = 'output window, operand 1, single buffered']
    #allocation9 [shape = 's32[1]{0}', space=sflag, size = 0x4, scoped, tag = 'scoped memory for tpu_custom_call.1']
    %14 = vsyncpa [#allocation7], 0
    %15 = vsyncpa [#allocation9], 0
    loop: start=0, step=1, limit=4
    $region2: #{tpu_custom_call.1} parent=1 // loop_pre_header
      _
    $region3: #{tpu_custom_call.1} parent=1 // loop_header
      %s17 = sphi 0, %s21
      %p18 = scmp.ge.s32.totalorder %s17, 4
      %s25 = sphi 0, %s25
      %s27 = sphi 0, %s25
      %s28 = sphi 0, %s27
      %s42 = sphi 0, %s28
      %s46 = sphi 0, %s46
      %s48 = sphi 0, %s46
      %s49 = sphi 0, %s48
      %s63 = sphi 0, %s49
      %s67 = sphi 0, %s67
      %s69 = sphi 0, %s67
      %s70 = sphi 0, %s69
      %s84 = sphi 0, %s70
      %s88 = sphi 0, %s88
      %s90 = sphi 0, %s88
      %s91 = sphi 0, %s90
      %s105 = sphi 0, %s91
      %s109 = sphi 0, %s109
      %s111 = sphi 0, %s109
      %s112 = sphi 0, %s111
      %s126 = sphi 0, %s112
      %s132 = sphi 0, %s134
      %s135 = sphi 0, %s132
      %s136 = sphi 0, %s135
      %s152 = sphi 0, %s136
      %s156 = sphi 0, %s156
      %s158 = sphi 0, %s156
      %s159 = sphi 0, %s158
      %s173 = sphi 0, %s159
      %s177 = sphi 0, %s177
      %s179 = sphi 0, %s177
      %s180 = sphi 0, %s179
      %s194 = sphi 0, %s180
      %s198 = sphi 0, %s198
      %s200 = sphi 0, %s198
      %s201 = sphi 0, %s200
      %s215 = sphi 0, %s201
    $region4: #{tpu_custom_call.1} parent=1 // loop_header_branch
      %20 = sbr.rel (%p18) target = $region8
    $region5: #{tpu_custom_call.1} parent=1 // loop_body
      %s22 = ssub.s32 %s17, 1
      %s23 = ssub.s32 %s17, 2
      %s24 = sadd.s32 %s17, 1
      %s26 = sadd.s32 %s25, 1
      %p29 = scmp.eq.s32.totalorder %s17, 1
      %p30 = scmp.ne.s32.totalorder %s25, %s27
      %p31 = scmp.eq.s32.totalorder %s17, 0
      %p32 = por %p30, %p31
      %p33 = scmp.ne.s32.totalorder %s25, %s27
      %p34 = scmp.eq.s32.totalorder %s22, 1
      %p35 = por %p33, %p34
      %p36 = scmp.ne.s32.totalorder %s27, %s28
      %p37 = scmp.eq.s32.totalorder %s22, 0
      %p38 = por %p36, %p37
      %p39 = scmp.ne.s32.totalorder %s27, %s28
      %p40 = scmp.eq.s32.totalorder %s23, 1
      %p41 = por %p39, %p40
      %p43 = scmp.ne.s32.totalorder %s28, %s42
      %p44 = scmp.eq.s32.totalorder %s23, 0
      %p45 = por %p43, %p44
      %s47 = sadd.s32 %s46, 1
      %p50 = scmp.eq.s32.totalorder %s17, 1
      %p51 = scmp.ne.s32.totalorder %s46, %s48
      %p52 = scmp.eq.s32.totalorder %s17, 0
      %p53 = por %p51, %p52
      %p54 = scmp.ne.s32.totalorder %s46, %s48
      %p55 = scmp.eq.s32.totalorder %s22, 1
      %p56 = por %p54, %p55
      %p57 = scmp.ne.s32.totalorder %s48, %s49
      %p58 = scmp.eq.s32.totalorder %s22, 0
      %p59 = por %p57, %p58
      %p60 = scmp.ne.s32.totalorder %s48, %s49
      %p61 = scmp.eq.s32.totalorder %s23, 1
      %p62 = por %p60, %p61
      %p64 = scmp.ne.s32.totalorder %s49, %s63
      %p65 = scmp.eq.s32.totalorder %s23, 0
      %p66 = por %p64, %p65
      %s68 = sadd.s32 %s67, 1
      %p71 = scmp.eq.s32.totalorder %s17, 1
      %p72 = scmp.ne.s32.totalorder %s67, %s69
      %p73 = scmp.eq.s32.totalorder %s17, 0
      %p74 = por %p72, %p73
      %p75 = scmp.ne.s32.totalorder %s67, %s69
      %p76 = scmp.eq.s32.totalorder %s22, 1
      %p77 = por %p75, %p76
      %p78 = scmp.ne.s32.totalorder %s69, %s70
      %p79 = scmp.eq.s32.totalorder %s22, 0
      %p80 = por %p78, %p79
      %p81 = scmp.ne.s32.totalorder %s69, %s70
      %p82 = scmp.eq.s32.totalorder %s23, 1
      %p83 = por %p81, %p82
      %p85 = scmp.ne.s32.totalorder %s70, %s84
      %p86 = scmp.eq.s32.totalorder %s23, 0
      %p87 = por %p85, %p86
      %s89 = sadd.s32 %s88, 1
      %p92 = scmp.eq.s32.totalorder %s17, 1
      %p93 = scmp.ne.s32.totalorder %s88, %s90
      %p94 = scmp.eq.s32.totalorder %s17, 0
      %p95 = por %p93, %p94
      %p96 = scmp.ne.s32.totalorder %s88, %s90
      %p97 = scmp.eq.s32.totalorder %s22, 1
      %p98 = por %p96, %p97
      %p99 = scmp.ne.s32.totalorder %s90, %s91
      %p100 = scmp.eq.s32.totalorder %s22, 0
      %p101 = por %p99, %p100
      %p102 = scmp.ne.s32.totalorder %s90, %s91
      %p103 = scmp.eq.s32.totalorder %s23, 1
      %p104 = por %p102, %p103
      %p106 = scmp.ne.s32.totalorder %s91, %s105
      %p107 = scmp.eq.s32.totalorder %s23, 0
      %p108 = por %p106, %p107
      %s110 = sadd.s32 %s109, 1
      %p113 = scmp.eq.s32.totalorder %s17, 1
      %p114 = scmp.ne.s32.totalorder %s109, %s111
      %p115 = scmp.eq.s32.totalorder %s17, 0
      %p116 = por %p114, %p115
      %p117 = scmp.ne.s32.totalorder %s109, %s111
      %p118 = scmp.eq.s32.totalorder %s22, 1
      %p119 = por %p117, %p118
      %p120 = scmp.ne.s32.totalorder %s111, %s112
      %p121 = scmp.eq.s32.totalorder %s22, 0
      %p122 = por %p120, %p121
      %p123 = scmp.ne.s32.totalorder %s111, %s112
      %p124 = scmp.eq.s32.totalorder %s23, 1
      %p125 = por %p123, %p124
      %p127 = scmp.ne.s32.totalorder %s112, %s126
      %p128 = scmp.eq.s32.totalorder %s23, 0
      %p129 = por %p127, %p128
      %s130 = ssub.s32 %s17, %s24
      %p131 = scmp.eq.s32.totalorder %s130, 0
      %s133 = sadd.s32 %s132, 1
      %s134 = scalar_select %p131, %s132, %s133
      %p137 = pneg %p131
      %p138 = scmp.eq.s32.totalorder %s17, 1
      %p139 = por %p137, %p138
      %p140 = scmp.ne.s32.totalorder %s132, %s135
      %p141 = scmp.eq.s32.totalorder %s17, 0
      %p142 = por %p140, %p141
      %p143 = scmp.ne.s32.totalorder %s132, %s135
      %p144 = scmp.eq.s32.totalorder %s22, 1
      %p145 = por %p143, %p144
      %p146 = scmp.ne.s32.totalorder %s135, %s136
      %p147 = scmp.eq.s32.totalorder %s22, 0
      %p148 = por %p146, %p147
      %p149 = scmp.ne.s32.totalorder %s135, %s136
      %p150 = scmp.eq.s32.totalorder %s23, 1
      %p151 = por %p149, %p150
      %p153 = scmp.ne.s32.totalorder %s136, %s152
      %p154 = scmp.eq.s32.totalorder %s23, 0
      %p155 = por %p153, %p154
      %s157 = sadd.s32 %s156, 1
      %p160 = scmp.eq.s32.totalorder %s17, 1
      %p161 = scmp.ne.s32.totalorder %s156, %s158
      %p162 = scmp.eq.s32.totalorder %s17, 0
      %p163 = por %p161, %p162
      %p164 = scmp.ne.s32.totalorder %s156, %s158
      %p165 = scmp.eq.s32.totalorder %s22, 1
      %p166 = por %p164, %p165
      %p167 = scmp.ne.s32.totalorder %s158, %s159
      %p168 = scmp.eq.s32.totalorder %s22, 0
      %p169 = por %p167, %p168
      %p170 = scmp.ne.s32.totalorder %s158, %s159
      %p171 = scmp.eq.s32.totalorder %s23, 1
      %p172 = por %p170, %p171
      %p174 = scmp.ne.s32.totalorder %s159, %s173
      %p175 = scmp.eq.s32.totalorder %s23, 0
      %p176 = por %p174, %p175
      %s178 = sadd.s32 %s177, 1
      %p181 = scmp.eq.s32.totalorder %s17, 1
      %p182 = scmp.ne.s32.totalorder %s177, %s179
      %p183 = scmp.eq.s32.totalorder %s17, 0
      %p184 = por %p182, %p183
      %p185 = scmp.ne.s32.totalorder %s177, %s179
      %p186 = scmp.eq.s32.totalorder %s22, 1
      %p187 = por %p185, %p186
      %p188 = scmp.ne.s32.totalorder %s179, %s180
      %p189 = scmp.eq.s32.totalorder %s22, 0
      %p190 = por %p188, %p189
      %p191 = scmp.ne.s32.totalorder %s179, %s180
      %p192 = scmp.eq.s32.totalorder %s23, 1
      %p193 = por %p191, %p192
      %p195 = scmp.ne.s32.totalorder %s180, %s194
      %p196 = scmp.eq.s32.totalorder %s23, 0
      %p197 = por %p195, %p196
      %s199 = sadd.s32 %s198, 1
      %p202 = scmp.eq.s32.totalorder %s17, 1
      %p203 = scmp.ne.s32.totalorder %s198, %s200
      %p204 = scmp.eq.s32.totalorder %s17, 0
      %p205 = por %p203, %p204
      %p206 = scmp.ne.s32.totalorder %s198, %s200
      %p207 = scmp.eq.s32.totalorder %s22, 1
      %p208 = por %p206, %p207
      %p209 = scmp.ne.s32.totalorder %s200, %s201
      %p210 = scmp.eq.s32.totalorder %s22, 0
      %p211 = por %p209, %p210
      %p212 = scmp.ne.s32.totalorder %s200, %s201
      %p213 = scmp.eq.s32.totalorder %s23, 1
      %p214 = por %p212, %p213
      %p216 = scmp.ne.s32.totalorder %s201, %s215
      %p217 = scmp.eq.s32.totalorder %s23, 0
      %p218 = por %p216, %p217
      %p219 = scmp.le.s32.totalorder 1, %s17
      %p220 = scmp.lt.s32.totalorder %s17, 3
      %p221 = pnand %p219, %p220
      %p222 = pneg %p221
      // Predicated region
      $region9: #{tpu_custom_call.1} parent=5 // pred_check
        _
      $region10: #{tpu_custom_call.1} parent=5 // pred_check_branch
        %224 = sbr.rel (%p221) target = $region12
      $region11: #{tpu_custom_call.1} parent=5 // pred_region
        %s225 = ssub.s32 %s17, 1
        // Predicated region
        $region13: #{tpu_custom_call.1} parent=11 // pred_check
          %p226 = pneg %p38
        $region14: #{tpu_custom_call.1} parent=11 // pred_check_branch
          %228 = sbr.rel (%p226) target = $region16
        $region15: #{tpu_custom_call.1} parent=11 // pred_region
          _
        $region16: #{tpu_custom_call.1} parent=11 // pred_fallthru
          _
        // Predicated region
        $region17: #{tpu_custom_call.1} parent=11 // pred_check
          %p229 = pneg %p59
        $region18: #{tpu_custom_call.1} parent=11 // pred_check_branch
          %231 = sbr.rel (%p229) target = $region20
        $region19: #{tpu_custom_call.1} parent=11 // pred_region
          _
        $region20: #{tpu_custom_call.1} parent=11 // pred_fallthru
          _
        // Predicated region
        $region21: #{tpu_custom_call.1} parent=11 // pred_check
          %p232 = pneg %p80
        $region22: #{tpu_custom_call.1} parent=11 // pred_check_branch
          %234 = sbr.rel (%p232) target = $region24
        $region23: #{tpu_custom_call.1} parent=11 // pred_region
          _
        $region24: #{tpu_custom_call.1} parent=11 // pred_fallthru
          _
        // Predicated region
        $region25: #{tpu_custom_call.1} parent=11 // pred_check
          %p235 = pneg %p101
        $region26: #{tpu_custom_call.1} parent=11 // pred_check_branch
          %237 = sbr.rel (%p235) target = $region28
        $region27: #{tpu_custom_call.1} parent=11 // pred_region
          _
        $region28: #{tpu_custom_call.1} parent=11 // pred_fallthru
          _
        // Predicated region
        $region29: #{tpu_custom_call.1} parent=11 // pred_check
          %p238 = pneg %p122
        $region30: #{tpu_custom_call.1} parent=11 // pred_check_branch
          %240 = sbr.rel (%p238) target = $region32
        $region31: #{tpu_custom_call.1} parent=11 // pred_region
          _
        $region32: #{tpu_custom_call.1} parent=11 // pred_fallthru
          _
        // Predicated region
        $region33: #{tpu_custom_call.1} parent=11 // pred_check
          %p241 = pneg %p169
        $region34: #{tpu_custom_call.1} parent=11 // pred_check_branch
          %243 = sbr.rel (%p241) target = $region36
        $region35: #{tpu_custom_call.1} parent=11 // pred_region
          _
        $region36: #{tpu_custom_call.1} parent=11 // pred_fallthru
          _
      $region12: #{tpu_custom_call.1} parent=5 // pred_fallthru
        _
      %p244 = scmp.lt.s32.totalorder %s17, 2
      // Predicated region
      $region37: #{tpu_custom_call.1} parent=5 // pred_check
        %p245 = pneg %p244
      $region38: #{tpu_custom_call.1} parent=5 // pred_check_branch
        %247 = sbr.rel (%p245) target = $region40
      $region39: #{tpu_custom_call.1} parent=5 // pred_region
        // Predicated region
        $region41: #{tpu_custom_call.1} parent=39 // pred_check
          %p248 = pneg %p142
        $region42: #{tpu_custom_call.1} parent=39 // pred_check_branch
          %250 = sbr.rel (%p248) target = $region44
        $region43: #{tpu_custom_call.1} parent=39 // pred_region
          %p251 = scmp.lt.s32.totalorder %s17, 1
          %s252 = scalar_select %p251, %s17, 1
          %s253 = smul.addr %s252, 6
          %s254 = smul.addr %s253, 8
          %s255 = scalar_lea.vmem %s5, %s254
        $region44: #{tpu_custom_call.1} parent=39 // pred_fallthru
          _
      $region40: #{tpu_custom_call.1} parent=5 // pred_fallthru
        _
      %p256 = scmp.le.s32.totalorder 1, %s17
      %p257 = scmp.lt.s32.totalorder %s17, 3
      %p258 = pnand %p256, %p257
      %p259 = pneg %p258
      // Predicated region
      $region45: #{tpu_custom_call.1} parent=5 // pred_check
        _
      $region46: #{tpu_custom_call.1} parent=5 // pred_check_branch
        %261 = sbr.rel (%p258) target = $region48
      $region47: #{tpu_custom_call.1} parent=5 // pred_region
        %s262 = ssub.s32 %s17, 1
        %p263 = pneg %p38
        %p264 = pneg %p35
        %p265 = pneg %p59
        %p266 = pneg %p56
        %p267 = pneg %p80
        %p268 = pneg %p77
        %p269 = pneg %p101
        %p270 = pneg %p98
        %p271 = pneg %p122
        %p272 = pneg %p119
        %p273 = scmp.lt.s32.totalorder %s22, 1
        %s274 = scalar_select %p273, %s22, 1
        %s275 = smul.addr %s274, 6
        %s276 = smul.addr %s275, 8
        %s277 = scalar_lea.vmem %s5, %s276
        %p278 = pneg %p148
        %p279 = pneg %p145
        %p280 = pneg %p169
        %p281 = pneg %p166
        %p282 = pneg %p190
        %p283 = pneg %p187
        %p284 = pneg %p211
        %p285 = pneg %p208
        %p286 = scmp.lt.s32.totalorder %s22, 1
        %s287 = scalar_select %p286, %s22, 1
        %s288 = smul.addr %s287, 6
        %s289 = smul.addr %s288, 8
        %s290 = scalar_lea.vmem %s5, %s289
        %p292 = scmp.eq.s32.totalorder %s22, 0
        // Predicated region
        $region49: #{tpu_custom_call.1} parent=47 // pred_check
          %p293 = pneg %p292
        $region50: #{tpu_custom_call.1} parent=47 // pred_check_branch
          %295 = sbr.rel (%p293) target = $region52
        $region51: #{tpu_custom_call.1} parent=47 // pred_region
          %v296 = vld [vmem:[%s0] sm:$0xff]
          %v297 = vld [vmem:[%s0 + $0x8] sm:$0xff]
          %vm298 = vcmask 261120
          %299 = vst.msk [vmem:[#allocation2] sm:$0xff] %vm298, %v296
          %300 = vst.msk [vmem:[#allocation2 + $0x8] sm:$0xff] %vm298, %v297
          %v301 = vld [vmem:[%s2] sm:$0xff]
          %v302 = vld [vmem:[%s2 + $0x8] sm:$0xff]
          %v303 = vld [vmem:[%s2 + $0x10] sm:$0xff]
          %v304 = vld [vmem:[%s2 + $0x18] sm:$0xff]
          %v305 = vlaneseq
          %v306 = vand.u32 %v305, 127
          %307 = vset.pattern.permute.xlu0 0
          %308 = vperm.xlu0 %307, %v301
          %v309 = vpop.permute.xlu0 %308
          %310 = vset.pattern.permute.xlu0 0
          %311 = vperm.xlu0 %310, %v302
          %v312 = vpop.permute.xlu0 %311
          %313 = vset.pattern.permute.xlu0 0
          %314 = vperm.xlu0 %313, %v303
          %v315 = vpop.permute.xlu0 %314
          %316 = vset.pattern.permute.xlu0 0
          %317 = vperm.xlu0 %316, %v304
          %v318 = vpop.permute.xlu0 %317
          %vm319 = vcmp.eq.s32.totalorder %v306, %v309
          %vm320 = vcmp.eq.s32.totalorder %v306, %v312
          %vm321 = vcmp.eq.s32.totalorder %v306, %v315
          %vm322 = vcmp.eq.s32.totalorder %v306, %v318
          %v323 = vsel %vm319, 1, 0
          %v324 = vsel %vm320, 1, 0
          %v325 = vsel %vm321, 1, 0
          %v326 = vsel %vm322, 1, 0
          %v327 = vcvt.s32.f32 %v323
          %v328 = vcvt.s32.f32 %v324
          %v329 = vcvt.s32.f32 %v325
          %v330 = vcvt.s32.f32 %v326
          %v331 = vpack.c.bf16 %v328, %v327
          %v332 = vpack.c.bf16 %v330, %v329
          %v335 = vunpack.c.l.b16 %v331
          %v336 = vunpack.c.h.b16 %v331
          %v337 = vunpack.c.l.b16 %v332
          %v338 = vunpack.c.h.b16 %v332
          %v339 = vpack.c.b16 %v335, %v335
          %v340 = vpack.c.b16 %v336, %v336
          %v341 = vpack.c.b16 %v337, %v337
          %v342 = vpack.c.b16 %v338, %v338
          %vm347 = vcmask 125952
          %348 = vst.msk [vmem:[#allocation3] sm:$0xf] %vm347, %v339
          %349 = vst.msk [vmem:[#allocation3 + $0x4] sm:$0xf] %vm347, %v340
          %350 = vst.msk [vmem:[#allocation3 + $0x8] sm:$0xf] %vm347, %v341
          %351 = vst.msk [vmem:[#allocation3 + $0xc] sm:$0xf] %vm347, %v342
          %352 = vset.pattern.permute.xlu0 1
          %353 = vperm.xlu0 %352, %v301
          %v354 = vpop.permute.xlu0 %353
          %355 = vset.pattern.permute.xlu0 1
          %356 = vperm.xlu0 %355, %v302
          %v357 = vpop.permute.xlu0 %356
          %358 = vset.pattern.permute.xlu0 1
          %359 = vperm.xlu0 %358, %v303
          %v360 = vpop.permute.xlu0 %359
          %361 = vset.pattern.permute.xlu0 1
          %362 = vperm.xlu0 %361, %v304
          %v363 = vpop.permute.xlu0 %362
          %vm364 = vcmp.eq.s32.totalorder %v306, %v354
          %vm365 = vcmp.eq.s32.totalorder %v306, %v357
          %vm366 = vcmp.eq.s32.totalorder %v306, %v360
          %vm367 = vcmp.eq.s32.totalorder %v306, %v363
          %v368 = vsel %vm364, 1, 0
          %v369 = vsel %vm365, 1, 0
          %v370 = vsel %vm366, 1, 0
          %v371 = vsel %vm367, 1, 0
          %v372 = vcvt.s32.f32 %v368
          %v373 = vcvt.s32.f32 %v369
          %v374 = vcvt.s32.f32 %v370
          %v375 = vcvt.s32.f32 %v371
          %v376 = vpack.c.bf16 %v373, %v372
          %v377 = vpack.c.bf16 %v375, %v374
          %v380 = vunpack.c.l.b16 %v376
          %v381 = vunpack.c.h.b16 %v376
          %v382 = vunpack.c.l.b16 %v377
          %v383 = vunpack.c.h.b16 %v377
          %v384 = vpack.c.b16 %v380, %v380
          %v385 = vpack.c.b16 %v381, %v381
          %v386 = vpack.c.b16 %v382, %v382
          %v387 = vpack.c.b16 %v383, %v383
          %392 = vst.msk [vmem:[#allocation4] sm:$0xf] %vm347, %v384
          %393 = vst.msk [vmem:[#allocation4 + $0x4] sm:$0xf] %vm347, %v385
          %394 = vst.msk [vmem:[#allocation4 + $0x8] sm:$0xf] %vm347, %v386
          %395 = vst.msk [vmem:[#allocation4 + $0xc] sm:$0xf] %vm347, %v387
          %v396 = vlaneseq
          %v397 = vshrl.u32 %v396, 7
          %v398 = vadd.s32 %v397, 8
          %v399 = vld [vmem:[%s3] sm:$0x1]
          %v400 = vlaneseq
          %v401 = vshrl.u32 %v400, 7
          %v402 = vsub.s32 0, %v401
          %v403 = vrot.slane %v399, %v402
          %vm404 = vcmp.eq.s32.totalorder %v397, %v403
          %vm405 = vcmp.eq.s32.totalorder %v398, %v403
          %v406 = vsel %vm404, 1, 0
          %v407 = vsel %vm405, 1, 0
          %v408 = vcvt.s32.f32 %v406
          %v409 = vcvt.s32.f32 %v407
          %v410 = vpack.c.bf16 %v409, %v408
          %v412 = vunpack.c.l.b16 %v410
          %v413 = vunpack.c.h.b16 %v410
          %v414 = vpack.c.b16 %v412, %v412
          %v415 = vpack.c.b16 %v413, %v413
          %vm418 = vcmask 257024
          %419 = vst.msk [vmem:[#allocation5] sm:$0xf] %vm418, %v414
          %420 = vst.msk [vmem:[#allocation5 + $0x4] sm:$0xf] %vm418, %v415
        $region52: #{tpu_custom_call.1} parent=47 // pred_fallthru
          _
        %v421 = vld [vmem:[#allocation2] sm:$0xff]
        %v422 = vld [vmem:[#allocation2 + $0x8] sm:$0xff]
        %v423 = vld [vmem:[%s290] sm:$0xff]
        %v424 = vld [vmem:[%s290 + $0x8] sm:$0xff]
        %v425 = vld [vmem:[%s290 + $0x10] sm:$0xff]
        %v426 = vld [vmem:[%s290 + $0x18] sm:$0xff]
        %v427 = vld [vmem:[%s290 + $0x20] sm:$0xff]
        %v428 = vld [vmem:[%s290 + $0x28] sm:$0xff]
        %v429 = vlaneseq
        %v430 = vshrl.u32 %v429, 7
        %v431 = vsub.s32 0, %v430
        %v432 = vrot.slane %v427, %v431
        %vm433 = vcmask 261120
        %v435 = vsel %vm433, %v421, 0
        %v438 = vsel %vm433, %v422, 0
        %440 = vmatprep.subr.mxu0 0.0
        %441 = vmatpush1.msra.mxu0 0.0
        %442 = vmatprep.subr.mxu0 0.0
        %443 = vmatpush1.msra.mxu0 0.0
        %444 = vmatprep.subr.mxu0 0.0
        %445 = vmatpush1.msra.mxu0 0.0
        %446 = vmatprep.subr.mxu0 0.0
        %447 = vmatpush1.msra.mxu0 0.0
        %448 = vmatprep.subr.mxu0 0.0
        %449 = vmatpush1.msra.mxu0 0.0
        %450 = vmatprep.subr.mxu0 0.0
        %451 = vmatpush1.msra.mxu0 0.0
        %452 = vmatprep.subr.mxu0 0.0
        %453 = vmatpush1.msra.mxu0 0.0
        %454 = vmatprep.subr.mxu0 0.0
        %455 = vmatpush1.msra.mxu0 0.0
        %456 = vmatprep.subr.mxu0 0.0
        %457 = vmatpush1.msra.mxu0 0.0
        %458 = vmatprep.subr.mxu0 0.0
        %459 = vmatpush1.msra.mxu0 0.0
        %460 = vmatprep.subr.mxu0 0.0
        %461 = vmatpush1.msra.mxu0 0.0
        %462 = vmatprep.subr.mxu0 0.0
        %463 = vmatpush1.msra.mxu0 0.0
        %464 = vmatprep.subr.mxu0 0.0
        %465 = vmatpush1.msra.mxu0 %v426
        %466 = vmatprep.subr.mxu0 0.0
        %467 = vmatpush1.msra.mxu0 %v425
        %468 = vmatprep.subr.mxu0 0.0
        %469 = vmatpush1.msra.mxu0 %v424
        %470 = vmatprep.subr.mxu0 0.0
        %471 = vmatpush1.msra.mxu0 %v423
        %472 = vmatprep.subr.mxu0 0.0
        %473 = vmatpush2.msra.mxu0 0.0
        %474 = vmatprep.subr.mxu0 0.0
        %475 = vmatpush2.msra.mxu0 0.0
        %476 = vmatprep.subr.mxu0 0.0
        %477 = vmatpush2.msra.mxu0 0.0
        %478 = vmatprep.subr.mxu0 0.0
        %479 = vmatpush2.msra.mxu0 0.0
        %480 = vmatprep.subr.mxu0 0.0
        %481 = vmatpush2.msra.mxu0 0.0
        %482 = vmatprep.subr.mxu0 0.0
        %483 = vmatpush2.msra.mxu0 0.0
        %484 = vmatprep.subr.mxu0 0.0
        %485 = vmatpush2.msra.mxu0 0.0
        %486 = vmatprep.subr.mxu0 0.0
        %487 = vmatpush2.msra.mxu0 0.0
        %488 = vmatprep.subr.mxu0 0.0
        %489 = vmatpush2.msra.mxu0 0.0
        %490 = vmatprep.subr.mxu0 0.0
        %491 = vmatpush2.msra.mxu0 0.0
        %492 = vmatprep.subr.mxu0 0.0
        %493 = vmatpush2.msra.mxu0 0.0
        %494 = vmatprep.subr.mxu0 0.0
        %495 = vmatpush2.msra.mxu0 0.0
        %496 = vmatprep.subr.mxu0 0.0
        %497 = vmatpush2.msra.mxu0 0.0
        %498 = vmatprep.subr.mxu0 0.0
        %499 = vmatpush2.msra.mxu0 0.0
        %500 = vmatprep.subr.mxu0 0.0
        %501 = vmatpush2.msra.mxu0 0.0
        %502 = vmatprep.subr.mxu0 0.0
        %503 = vmatpush2.msra.mxu0 0.0
        %504 = vmatprep.mubr.f32.mxu0 0.0
        %505 = vmatmul.mubr.f32.gmra.mxu0 %v435
        %v506 = vpop.f32.mrf.mxu0
        %v507 = vadd.f32 %v432, %v506
        %v508 = vpop.f32.mrf.mxu0
        %509 = vmatprep.mubr.f32.mxu0 0.0
        %510 = vmatmul.mubr.f32.gmra.mxu0 %v438
        %v511 = vpop.f32.mrf.mxu0
        %v512 = vadd.f32 %v432, %v511
        %v513 = vpop.f32.mrf.mxu0
        %514 = vdwg.mxu0
        %v515 = vld [vmem:[%s1] sm:$0xff]
        %v516 = vld [vmem:[%s1 + $0x8] sm:$0xff]
        %v517 = vld [vmem:[%s1 + $0x10] sm:$0xff]
        %v518 = vld [vmem:[%s1 + $0x18] sm:$0xff]
        %vm519 = vcmask 64512
        %v521 = vsel %vm519, %v515, 0
        %v524 = vsel %vm519, %v516, 0
        %v527 = vsel %vm519, %v517, 0
        %v530 = vsel %vm519, %v518, 0
        %532 = vmatprep.subr.mxu0 0.0
        %533 = vmatpush1.msra.mxu0 0.0
        %534 = vmatprep.subr.mxu0 0.0
        %535 = vmatpush1.msra.mxu0 0.0
        %536 = vmatprep.subr.mxu0 0.0
        %537 = vmatpush1.msra.mxu0 0.0
        %538 = vmatprep.subr.mxu0 0.0
        %539 = vmatpush1.msra.mxu0 0.0
        %540 = vmatprep.subr.mxu0 0.0
        %541 = vmatpush1.msra.mxu0 0.0
        %542 = vmatprep.subr.mxu0 0.0
        %543 = vmatpush1.msra.mxu0 0.0
        %544 = vmatprep.subr.mxu0 0.0
        %545 = vmatpush1.msra.mxu0 0.0
        %546 = vmatprep.subr.mxu0 0.0
        %547 = vmatpush1.msra.mxu0 0.0
        %548 = vmatprep.subr.mxu0 0.0
        %549 = vmatpush1.msra.mxu0 0.0
        %550 = vmatprep.subr.mxu0 0.0
        %551 = vmatpush1.msra.mxu0 0.0
        %552 = vmatprep.subr.mxu0 0.0
        %553 = vmatpush1.msra.mxu0 0.0
        %554 = vmatprep.subr.mxu0 0.0
        %555 = vmatpush1.msra.mxu0 0.0
        %556 = vmatprep.subr.mxu0 0.0
        %557 = vmatpush1.msra.mxu0 0.0
        %558 = vmatprep.subr.mxu0 0.0
        %559 = vmatpush1.msra.mxu0 0.0
        %560 = vmatprep.subr.mxu0 0.0
        %561 = vmatpush1.msra.mxu0 0.0
        %562 = vmatprep.subr.mxu0 0.0
        %563 = vmatpush1.msra.mxu0 %v428
        %564 = vmatprep.subr.mxu0 0.0
        %565 = vmatpush2.msra.mxu0 0.0
        %566 = vmatprep.subr.mxu0 0.0
        %567 = vmatpush2.msra.mxu0 0.0
        %568 = vmatprep.subr.mxu0 0.0
        %569 = vmatpush2.msra.mxu0 0.0
        %570 = vmatprep.subr.mxu0 0.0
        %571 = vmatpush2.msra.mxu0 0.0
        %572 = vmatprep.subr.mxu0 0.0
        %573 = vmatpush2.msra.mxu0 0.0
        %574 = vmatprep.subr.mxu0 0.0
        %575 = vmatpush2.msra.mxu0 0.0
        %576 = vmatprep.subr.mxu0 0.0
        %577 = vmatpush2.msra.mxu0 0.0
        %578 = vmatprep.subr.mxu0 0.0
        %579 = vmatpush2.msra.mxu0 0.0
        %580 = vmatprep.subr.mxu0 0.0
        %581 = vmatpush2.msra.mxu0 0.0
        %582 = vmatprep.subr.mxu0 0.0
        %583 = vmatpush2.msra.mxu0 0.0
        %584 = vmatprep.subr.mxu0 0.0
        %585 = vmatpush2.msra.mxu0 0.0
        %586 = vmatprep.subr.mxu0 0.0
        %587 = vmatpush2.msra.mxu0 0.0
        %588 = vmatprep.subr.mxu0 0.0
        %589 = vmatpush2.msra.mxu0 0.0
        %590 = vmatprep.subr.mxu0 0.0
        %591 = vmatpush2.msra.mxu0 0.0
        %592 = vmatprep.subr.mxu0 0.0
        %593 = vmatpush2.msra.mxu0 0.0
        %594 = vmatprep.subr.mxu0 0.0
        %595 = vmatpush2.msra.mxu0 0.0
        %596 = vmatprep.mubr.f32.mxu0 0.0
        %597 = vmatmul.mubr.f32.gmra.mxu0 %v521
        %v598 = vpop.f32.mrf.mxu0
        %v599 = vadd.f32 0.0, %v598
        %v600 = vpop.f32.mrf.mxu0
        %601 = vmatprep.mubr.f32.mxu0 0.0
        %602 = vmatmul.mubr.f32.gmra.mxu0 %v524
        %v603 = vpop.f32.mrf.mxu0
        %v604 = vadd.f32 0.0, %v603
        %v605 = vpop.f32.mrf.mxu0
        %606 = vmatprep.mubr.f32.mxu0 0.0
        %607 = vmatmul.mubr.f32.gmra.mxu0 %v527
        %v608 = vpop.f32.mrf.mxu0
        %v609 = vadd.f32 0.0, %v608
        %v610 = vpop.f32.mrf.mxu0
        %611 = vmatprep.mubr.f32.mxu0 0.0
        %612 = vmatmul.mubr.f32.gmra.mxu0 %v530
        %v613 = vpop.f32.mrf.mxu0
        %v614 = vadd.f32 0.0, %v613
        %v615 = vpop.f32.mrf.mxu0
        %616 = vdwg.mxu0
        %v617 = vld [vmem:[#allocation4] sm:$0xf]
        %v618 = vld [vmem:[#allocation4 + $0x4] sm:$0xf]
        %v619 = vld [vmem:[#allocation4 + $0x8] sm:$0xf]
        %v620 = vld [vmem:[#allocation4 + $0xc] sm:$0xf]
        %v621 = vpack.c.bf16 %v512, %v507
        %v626 = vunpack.c.l.b16 %v617
        %v627 = vunpack.c.l.b16 %v618
        %v628 = vunpack.c.l.b16 %v619
        %v629 = vunpack.c.l.b16 %v620
        %v630 = vpack.c.b16 %v627, %v626
        %v631 = vpack.c.b16 %v629, %v628
        %633 = vrot.lane.b32.xlu0 %v621, 64
        %v634 = vpop.permute.xlu0 %633
        %vm636 = vcmask 130048
        %v638 = vsel %vm636, %v630, 0
        %v641 = vsel %vm636, %v631, 0
        %643 = vmatprep.subr.bf16.mxu0 0
        %644 = vmatpush1.bf16.msra.mxu0 0
        %645 = vmatprep.subr.bf16.mxu0 0
        %646 = vmatpush1.bf16.msra.mxu0 0
        %647 = vmatprep.subr.bf16.mxu0 0
        %648 = vmatpush1.bf16.msra.mxu0 0
        %649 = vmatprep.subr.bf16.mxu0 0
        %650 = vmatpush1.bf16.msra.mxu0 0
        %651 = vmatprep.subr.bf16.mxu0 0
        %652 = vmatpush1.bf16.msra.mxu0 0
        %653 = vmatprep.subr.bf16.mxu0 0
        %654 = vmatpush1.bf16.msra.mxu0 0
        %655 = vmatprep.subr.bf16.mxu0 0
        %656 = vmatpush1.bf16.msra.mxu0 0
        %657 = vmatprep.subr.bf16.mxu0 0
        %658 = vmatpush1.bf16.msra.mxu0 %v634
        %659 = vmatprep.subr.bf16.mxu0 0
        %660 = vmatpush2.bf16.msra.mxu0 0
        %661 = vmatprep.subr.bf16.mxu0 0
        %662 = vmatpush2.bf16.msra.mxu0 0
        %663 = vmatprep.subr.bf16.mxu0 0
        %664 = vmatpush2.bf16.msra.mxu0 0
        %665 = vmatprep.subr.bf16.mxu0 0
        %666 = vmatpush2.bf16.msra.mxu0 0
        %667 = vmatprep.subr.bf16.mxu0 0
        %668 = vmatpush2.bf16.msra.mxu0 0
        %669 = vmatprep.subr.bf16.mxu0 0
        %670 = vmatpush2.bf16.msra.mxu0 0
        %671 = vmatprep.subr.bf16.mxu0 0
        %672 = vmatpush2.bf16.msra.mxu0 0
        %673 = vmatprep.subr.bf16.mxu0 0
        %674 = vmatpush2.bf16.msra.mxu0 0
        %675 = vmatprep.mubr.bf16.mxu0 0
        %676 = vmatmul.mubr.bf16.gmra.mxu0 %v638
        %v677 = vpop.f32.mrf.mxu0
        %v678 = vadd.f32 %v599, %v677
        %v679 = vpop.f32.mrf.mxu0
        %v680 = vpop.f32.mrf.mxu0
        %v681 = vadd.f32 %v604, %v680
        %v682 = vpop.f32.mrf.mxu0
        %683 = vmatprep.mubr.bf16.mxu0 0
        %684 = vmatmul.mubr.bf16.gmra.mxu0 %v641
        %v685 = vpop.f32.mrf.mxu0
        %v686 = vadd.f32 %v609, %v685
        %v687 = vpop.f32.mrf.mxu0
        %v688 = vpop.f32.mrf.mxu0
        %v689 = vadd.f32 %v614, %v688
        %v690 = vpop.f32.mrf.mxu0
        %691 = vdwg.mxu0
        %v692 = vld [vmem:[#allocation3] sm:$0xf]
        %v693 = vld [vmem:[#allocation3 + $0x4] sm:$0xf]
        %v694 = vld [vmem:[#allocation3 + $0x8] sm:$0xf]
        %v695 = vld [vmem:[#allocation3 + $0xc] sm:$0xf]
        %v700 = vunpack.c.l.b16 %v692
        %v701 = vunpack.c.l.b16 %v693
        %v702 = vunpack.c.l.b16 %v694
        %v703 = vunpack.c.l.b16 %v695
        %v704 = vpack.c.b16 %v701, %v700
        %v705 = vpack.c.b16 %v703, %v702
        %v707 = vsel %vm636, %v704, 0
        %v710 = vsel %vm636, %v705, 0
        %712 = vmatprep.subr.bf16.mxu0 0
        %713 = vmatpush1.bf16.msra.mxu0 0
        %714 = vmatprep.subr.bf16.mxu0 0
        %715 = vmatpush1.bf16.msra.mxu0 0
        %716 = vmatprep.subr.bf16.mxu0 0
        %717 = vmatpush1.bf16.msra.mxu0 0
        %718 = vmatprep.subr.bf16.mxu0 0
        %719 = vmatpush1.bf16.msra.mxu0 0
        %720 = vmatprep.subr.bf16.mxu0 0
        %721 = vmatpush1.bf16.msra.mxu0 0
        %722 = vmatprep.subr.bf16.mxu0 0
        %723 = vmatpush1.bf16.msra.mxu0 0
        %724 = vmatprep.subr.bf16.mxu0 0
        %725 = vmatpush1.bf16.msra.mxu0 0
        %726 = vmatprep.subr.bf16.mxu0 0
        %727 = vmatpush1.bf16.msra.mxu0 %v621
        %728 = vmatprep.subr.bf16.mxu0 0
        %729 = vmatpush2.bf16.msra.mxu0 0
        %730 = vmatprep.subr.bf16.mxu0 0
        %731 = vmatpush2.bf16.msra.mxu0 0
        %732 = vmatprep.subr.bf16.mxu0 0
        %733 = vmatpush2.bf16.msra.mxu0 0
        %734 = vmatprep.subr.bf16.mxu0 0
        %735 = vmatpush2.bf16.msra.mxu0 0
        %736 = vmatprep.subr.bf16.mxu0 0
        %737 = vmatpush2.bf16.msra.mxu0 0
        %738 = vmatprep.subr.bf16.mxu0 0
        %739 = vmatpush2.bf16.msra.mxu0 0
        %740 = vmatprep.subr.bf16.mxu0 0
        %741 = vmatpush2.bf16.msra.mxu0 0
        %742 = vmatprep.subr.bf16.mxu0 0
        %743 = vmatpush2.bf16.msra.mxu0 0
        %744 = vmatprep.mubr.bf16.mxu0 0
        %745 = vmatmul.mubr.bf16.gmra.mxu0 %v707
        %v746 = vpop.f32.mrf.mxu0
        %v747 = vadd.f32 0.0, %v746
        %v748 = vpop.f32.mrf.mxu0
        %v749 = vpop.f32.mrf.mxu0
        %v750 = vadd.f32 0.0, %v749
        %v751 = vpop.f32.mrf.mxu0
        %752 = vmatprep.mubr.bf16.mxu0 0
        %753 = vmatmul.mubr.bf16.gmra.mxu0 %v710
        %v754 = vpop.f32.mrf.mxu0
        %v755 = vadd.f32 0.0, %v754
        %v756 = vpop.f32.mrf.mxu0
        %v757 = vpop.f32.mrf.mxu0
        %v758 = vadd.f32 0.0, %v757
        %v759 = vpop.f32.mrf.mxu0
        %760 = vdwg.mxu0
        %v761 = vadd.f32 %v747, %v599
        %v762 = vadd.f32 %v750, %v604
        %v763 = vadd.f32 %v755, %v609
        %v764 = vadd.f32 %v758, %v614
        %769 = vrot.lane.b32.xlu0 %v599, 32
        %v770 = vpop.permute.xlu0 %769
        %771 = vrot.lane.b32.xlu0 %v604, 32
        %v772 = vpop.permute.xlu0 %771
        %773 = vrot.lane.b32.xlu0 %v609, 32
        %v774 = vpop.permute.xlu0 %773
        %775 = vrot.lane.b32.xlu0 %v614, 32
        %v776 = vpop.permute.xlu0 %775
        %v781 = vadd.f32 %v747, %v770
        %v782 = vadd.f32 %v750, %v772
        %v783 = vadd.f32 %v755, %v774
        %v784 = vadd.f32 %v758, %v776
        %v785 = vadd.f32 %v678, %v761
        %v786 = vadd.f32 %v681, %v762
        %v787 = vadd.f32 %v686, %v763
        %v788 = vadd.f32 %v689, %v764
        %v789 = vxor.u32 %v785, 2147483648
        %v790 = vxor.u32 %v786, 2147483648
        %v791 = vxor.u32 %v787, 2147483648
        %v792 = vxor.u32 %v788, 2147483648
        %v793 = vmul.f32 %v789, 1.442695
        %v794 = vpow.pop %v793
        %v795 = vmul.f32 %v790, 1.442695
        %v796 = vpow.pop %v795
        %v797 = vmul.f32 %v791, 1.442695
        %v798 = vpow.pop %v797
        %v799 = vmul.f32 %v792, 1.442695
        %v800 = vpow.pop %v799
        %v801 = vadd.f32 %v794, 1.0
        %v802 = vadd.f32 %v796, 1.0
        %v803 = vadd.f32 %v798, 1.0
        %v804 = vadd.f32 %v800, 1.0
        %v805 = vrcp.pop %v801
        %v806 = vmul.f32 1.0, %v805
        %v807 = vrcp.pop %v802
        %v808 = vmul.f32 1.0, %v807
        %v809 = vrcp.pop %v803
        %v810 = vmul.f32 1.0, %v809
        %v811 = vrcp.pop %v804
        %v812 = vmul.f32 1.0, %v811
        %817 = vrot.lane.b32.xlu0 %v781, 96
        %v818 = vpop.permute.xlu0 %817
        %819 = vrot.lane.b32.xlu0 %v782, 96
        %v820 = vpop.permute.xlu0 %819
        %821 = vrot.lane.b32.xlu0 %v783, 96
        %v822 = vpop.permute.xlu0 %821
        %823 = vrot.lane.b32.xlu0 %v784, 96
        %v824 = vpop.permute.xlu0 %823
        %v829 = vmul.f32 %v806, %v818
        %v830 = vmul.f32 %v808, %v820
        %v831 = vmul.f32 %v810, %v822
        %v832 = vmul.f32 %v812, %v824
        %v833 = vld [vmem:[#allocation5] sm:$0xf]
        %v834 = vld [vmem:[#allocation5 + $0x4] sm:$0xf]
        %v835 = vpack.c.bf16 %v830, %v829
        %v836 = vpack.c.bf16 %v832, %v831
        %v839 = vunpack.c.l.b16 %v833
        %v840 = vunpack.c.l.b16 %v834
        %v841 = vpack.c.b16 %v840, %v839
        %844 = vrot.lane.b32.xlu0 %v507, 32
        %v845 = vpop.permute.xlu0 %844
        %846 = vrot.lane.b32.xlu0 %v512, 32
        %v847 = vpop.permute.xlu0 %846
        %v851 = vsel %vm433, %v841, 0
        %853 = vmatprep.subr.bf16.mxu0 0
        %854 = vmatpush1.bf16.msra.mxu0 0
        %855 = vmatprep.subr.bf16.mxu0 0
        %856 = vmatpush1.bf16.msra.mxu0 0
        %857 = vmatprep.subr.bf16.mxu0 0
        %858 = vmatpush1.bf16.msra.mxu0 0
        %859 = vmatprep.subr.bf16.mxu0 0
        %860 = vmatpush1.bf16.msra.mxu0 0
        %861 = vmatprep.subr.bf16.mxu0 0
        %862 = vmatpush1.bf16.msra.mxu0 0
        %863 = vmatprep.subr.bf16.mxu0 0
        %864 = vmatpush1.bf16.msra.mxu0 0
        %865 = vmatprep.subr.bf16.mxu0 0
        %866 = vmatpush1.bf16.msra.mxu0 %v836
        %867 = vmatprep.subr.bf16.mxu0 0
        %868 = vmatpush1.bf16.msra.mxu0 %v835
        %869 = vmatprep.subr.bf16.mxu0 0
        %870 = vmatpush2.bf16.msra.mxu0 0
        %871 = vmatprep.subr.bf16.mxu0 0
        %872 = vmatpush2.bf16.msra.mxu0 0
        %873 = vmatprep.subr.bf16.mxu0 0
        %874 = vmatpush2.bf16.msra.mxu0 0
        %875 = vmatprep.subr.bf16.mxu0 0
        %876 = vmatpush2.bf16.msra.mxu0 0
        %877 = vmatprep.subr.bf16.mxu0 0
        %878 = vmatpush2.bf16.msra.mxu0 0
        %879 = vmatprep.subr.bf16.mxu0 0
        %880 = vmatpush2.bf16.msra.mxu0 0
        %881 = vmatprep.subr.bf16.mxu0 0
        %882 = vmatpush2.bf16.msra.mxu0 0
        %883 = vmatprep.subr.bf16.mxu0 0
        %884 = vmatpush2.bf16.msra.mxu0 0
        %885 = vmatprep.mubr.bf16.mxu0 0
        %886 = vmatmul.mubr.bf16.gmra.mxu0 %v851
        %v887 = vpop.f32.mrf.mxu0
        %v888 = vadd.f32 %v845, %v887
        %v889 = vpop.f32.mrf.mxu0
        %v890 = vpop.f32.mrf.mxu0
        %v891 = vadd.f32 %v847, %v890
        %v892 = vpop.f32.mrf.mxu0
        %893 = vdwg.mxu0
        %894 = vst.msk [vmem:[#allocation2] sm:$0xff] %vm433, %v888
        %895 = vst.msk [vmem:[#allocation2 + $0x8] sm:$0xff] %vm433, %v891
        %p896 = scmp.eq.s32.totalorder %s22, 1
        %p897 = scmp.ne.s32.totalorder %s22, 1
        // Predicated region
        $region53: #{tpu_custom_call.1} parent=47 // pred_check
          %p898 = pneg %p897
        $region54: #{tpu_custom_call.1} parent=47 // pred_check_branch
          %900 = sbr.rel (%p898) target = $region56
        $region55: #{tpu_custom_call.1} parent=47 // pred_region
          %v901 = vld [vmem:[#allocation2] sm:$0xff]
          %v902 = vld [vmem:[#allocation2 + $0x8] sm:$0xff]
          %v903 = vmax.f32 %v901, 0.0
          %v904 = vmax.f32 %v902, 0.0
          %905 = vst.msk [vmem:[#allocation2] sm:$0xff] %vm433, %v903
          %906 = vst.msk [vmem:[#allocation2 + $0x8] sm:$0xff] %vm433, %v904
        $region56: #{tpu_custom_call.1} parent=47 // pred_fallthru
          _
        // Predicated region
        $region57: #{tpu_custom_call.1} parent=47 // pred_check
          %p907 = pneg %p896
        $region58: #{tpu_custom_call.1} parent=47 // pred_check_branch
          %909 = sbr.rel (%p907) target = $region60
        $region59: #{tpu_custom_call.1} parent=47 // pred_region
          %v910 = vld [vmem:[%s6] sm:$0xff]
          %v911 = vld [vmem:[%s6 + $0x8] sm:$0xff]
          %v912 = vld [vmem:[%s6 + $0x10] sm:$0xff]
          %v913 = vld [vmem:[%s6 + $0x18] sm:$0xff]
          %v914 = vld [vmem:[%s6 + $0x20] sm:$0xff]
          %v915 = vld [vmem:[#allocation2] sm:$0xff]
          %v916 = vld [vmem:[#allocation2 + $0x8] sm:$0xff]
          %v917 = vsel %vm433, %v915, 0.0
          %918 = vadd.xlane.f32.xlu0 %v917
          %v919 = vpop.xlane.xlu0 %918
          %v920 = vsel %vm433, %v916, 0.0
          %921 = vadd.xlane.f32.xlu0 %v920
          %v922 = vpop.xlane.xlu0 %921
          %v923 = vrcp.pop 32.0
          %v924 = vmul.f32 %v919, %v923
          %v925 = vmul.f32 %v922, %v923
          %v926 = vsub.f32 %v915, %v924
          %v927 = vsub.f32 %v916, %v925
          %v928 = vmul.f32 %v926, %v926
          %v929 = vmul.f32 %v927, %v927
          %v930 = vsel %vm433, %v928, 0.0
          %931 = vadd.xlane.f32.xlu0 %v930
          %v932 = vpop.xlane.xlu0 %931
          %v933 = vsel %vm433, %v929, 0.0
          %934 = vadd.xlane.f32.xlu0 %v933
          %v935 = vpop.xlane.xlu0 %934
          %v936 = vmul.f32 %v932, %v923
          %v937 = vmul.f32 %v935, %v923
          %v938 = vadd.f32 %v936, 1e-05
          %v939 = vadd.f32 %v937, 1e-05
          %v940 = vrsqrt.pop %v938
          %v941 = vrsqrt.pop %v939
          %v942 = vmul.f32 %v926, %v940
          %v943 = vmul.f32 %v927, %v941
          %v944 = vlaneseq
          %v945 = vshrl.u32 %v944, 7
          %v946 = vsub.s32 1, %v945
          %v947 = vrot.slane %v914, %v946
          %v948 = vmul.f32 %v942, %v947
          %v949 = vmul.f32 %v943, %v947
          %v950 = vlaneseq
          %v951 = vshrl.u32 %v950, 7
          %v952 = vsub.s32 2, %v951
          %v953 = vrot.slane %v914, %v952
          %v954 = vadd.f32 %v948, %v953
          %v955 = vadd.f32 %v949, %v953
          %956 = vst.msk [vmem:[#allocation6] sm:$0xff] %vm433, %v954
          %957 = vst.msk [vmem:[#allocation6 + $0x8] sm:$0xff] %vm433, %v955
          %v958 = vlaneseq
          %v959 = vshrl.u32 %v958, 7
          %v960 = vld [vmem:[%s4] sm:$0x1]
          %v961 = vlaneseq
          %v962 = vshrl.u32 %v961, 7
          %v963 = vsub.s32 0, %v962
          %v964 = vrot.slane %v960, %v963
          %vm965 = vcmp.eq.s32.totalorder %v959, %v964
          %v966 = vsel %vm965, 1, 0
          %v967 = vcvt.s32.f32 %v966
          %vm968 = vcmask 123904
          %v969 = vsel %vm968, %v967, 0.0
          %970 = vadd.xlane.f32.xlu0 %v969
          %v971 = vpop.xlane.xlu0 %970
          %v973 = vsel %vm636, %v967, 0
          %975 = vmatprep.subr.mxu0 0.0
          %976 = vmatpush1.msra.mxu0 0.0
          %977 = vmatprep.subr.mxu0 0.0
          %978 = vmatpush1.msra.mxu0 0.0
          %979 = vmatprep.subr.mxu0 0.0
          %980 = vmatpush1.msra.mxu0 0.0
          %981 = vmatprep.subr.mxu0 0.0
          %982 = vmatpush1.msra.mxu0 0.0
          %983 = vmatprep.subr.mxu0 0.0
          %984 = vmatpush1.msra.mxu0 0.0
          %985 = vmatprep.subr.mxu0 0.0
          %986 = vmatpush1.msra.mxu0 0.0
          %987 = vmatprep.subr.mxu0 0.0
          %988 = vmatpush1.msra.mxu0 0.0
          %989 = vmatprep.subr.mxu0 0.0
          %990 = vmatpush1.msra.mxu0 0.0
          %991 = vmatprep.subr.mxu0 0.0
          %992 = vmatpush1.msra.mxu0 0.0
          %993 = vmatprep.subr.mxu0 0.0
          %994 = vmatpush1.msra.mxu0 0.0
          %995 = vmatprep.subr.mxu0 0.0
          %996 = vmatpush1.msra.mxu0 0.0
          %997 = vmatprep.subr.mxu0 0.0
          %998 = vmatpush1.msra.mxu0 0.0
          %999 = vmatprep.subr.mxu0 0.0
          %1000 = vmatpush1.msra.mxu0 0.0
          %1001 = vmatprep.subr.mxu0 0.0
          %1002 = vmatpush1.msra.mxu0 0.0
          %1003 = vmatprep.subr.mxu0 0.0
          %1004 = vmatpush1.msra.mxu0 %v916
          %1005 = vmatprep.subr.mxu0 0.0
          %1006 = vmatpush1.msra.mxu0 %v915
          %1007 = vmatprep.subr.mxu0 0.0
          %1008 = vmatpush2.msra.mxu0 0.0
          %1009 = vmatprep.subr.mxu0 0.0
          %1010 = vmatpush2.msra.mxu0 0.0
          %1011 = vmatprep.subr.mxu0 0.0
          %1012 = vmatpush2.msra.mxu0 0.0
          %1013 = vmatprep.subr.mxu0 0.0
          %1014 = vmatpush2.msra.mxu0 0.0
          %1015 = vmatprep.subr.mxu0 0.0
          %1016 = vmatpush2.msra.mxu0 0.0
          %1017 = vmatprep.subr.mxu0 0.0
          %1018 = vmatpush2.msra.mxu0 0.0
          %1019 = vmatprep.subr.mxu0 0.0
          %1020 = vmatpush2.msra.mxu0 0.0
          %1021 = vmatprep.subr.mxu0 0.0
          %1022 = vmatpush2.msra.mxu0 0.0
          %1023 = vmatprep.subr.mxu0 0.0
          %1024 = vmatpush2.msra.mxu0 0.0
          %1025 = vmatprep.subr.mxu0 0.0
          %1026 = vmatpush2.msra.mxu0 0.0
          %1027 = vmatprep.subr.mxu0 0.0
          %1028 = vmatpush2.msra.mxu0 0.0
          %1029 = vmatprep.subr.mxu0 0.0
          %1030 = vmatpush2.msra.mxu0 0.0
          %1031 = vmatprep.subr.mxu0 0.0
          %1032 = vmatpush2.msra.mxu0 0.0
          %1033 = vmatprep.subr.mxu0 0.0
          %1034 = vmatpush2.msra.mxu0 0.0
          %1035 = vmatprep.subr.mxu0 0.0
          %1036 = vmatpush2.msra.mxu0 0.0
          %1037 = vmatprep.subr.mxu0 0.0
          %1038 = vmatpush2.msra.mxu0 0.0
          %1039 = vmatprep.mubr.f32.mxu0 0.0
          %1040 = vmatmul.mubr.f32.gmra.mxu0 %v973
          %v1041 = vpop.f32.mrf.mxu0
          %v1042 = vadd.f32 0.0, %v1041
          %v1043 = vpop.f32.mrf.mxu0
          %1044 = vdwg.mxu0
          %v1045 = vmax.f32 %v971, 1.0
          %v1046 = vrcp.pop %v1045
          %v1047 = vmul.f32 %v1042, %v1046
          %v1048 = vlaneseq
          %v1049 = vshrl.u32 %v1048, 7
          %v1050 = vsub.s32 0, %v1049
          %v1051 = vrot.slane %v914, %v1050
          %v1053 = vsel %vm433, %v1047, 0
          %1055 = vmatprep.subr.mxu0 0.0
          %1056 = vmatpush1.msra.mxu0 0.0
          %1057 = vmatprep.subr.mxu0 0.0
          %1058 = vmatpush1.msra.mxu0 0.0
          %1059 = vmatprep.subr.mxu0 0.0
          %1060 = vmatpush1.msra.mxu0 0.0
          %1061 = vmatprep.subr.mxu0 0.0
          %1062 = vmatpush1.msra.mxu0 0.0
          %1063 = vmatprep.subr.mxu0 0.0
          %1064 = vmatpush1.msra.mxu0 0.0
          %1065 = vmatprep.subr.mxu0 0.0
          %1066 = vmatpush1.msra.mxu0 0.0
          %1067 = vmatprep.subr.mxu0 0.0
          %1068 = vmatpush1.msra.mxu0 0.0
          %1069 = vmatprep.subr.mxu0 0.0
          %1070 = vmatpush1.msra.mxu0 0.0
          %1071 = vmatprep.subr.mxu0 0.0
          %1072 = vmatpush1.msra.mxu0 0.0
          %1073 = vmatprep.subr.mxu0 0.0
          %1074 = vmatpush1.msra.mxu0 0.0
          %1075 = vmatprep.subr.mxu0 0.0
          %1076 = vmatpush1.msra.mxu0 0.0
          %1077 = vmatprep.subr.mxu0 0.0
          %1078 = vmatpush1.msra.mxu0 0.0
          %1079 = vmatprep.subr.mxu0 0.0
          %1080 = vmatpush1.msra.mxu0 %v913
          %1081 = vmatprep.subr.mxu0 0.0
          %1082 = vmatpush1.msra.mxu0 %v912
          %1083 = vmatprep.subr.mxu0 0.0
          %1084 = vmatpush1.msra.mxu0 %v911
          %1085 = vmatprep.subr.mxu0 0.0
          %1086 = vmatpush1.msra.mxu0 %v910
          %1087 = vmatprep.subr.mxu0 0.0
          %1088 = vmatpush2.msra.mxu0 0.0
          %1089 = vmatprep.subr.mxu0 0.0
          %1090 = vmatpush2.msra.mxu0 0.0
          %1091 = vmatprep.subr.mxu0 0.0
          %1092 = vmatpush2.msra.mxu0 0.0
          %1093 = vmatprep.subr.mxu0 0.0
          %1094 = vmatpush2.msra.mxu0 0.0
          %1095 = vmatprep.subr.mxu0 0.0
          %1096 = vmatpush2.msra.mxu0 0.0
          %1097 = vmatprep.subr.mxu0 0.0
          %1098 = vmatpush2.msra.mxu0 0.0
          %1099 = vmatprep.subr.mxu0 0.0
          %1100 = vmatpush2.msra.mxu0 0.0
          %1101 = vmatprep.subr.mxu0 0.0
          %1102 = vmatpush2.msra.mxu0 0.0
          %1103 = vmatprep.subr.mxu0 0.0
          %1104 = vmatpush2.msra.mxu0 0.0
          %1105 = vmatprep.subr.mxu0 0.0
          %1106 = vmatpush2.msra.mxu0 0.0
          %1107 = vmatprep.subr.mxu0 0.0
          %1108 = vmatpush2.msra.mxu0 0.0
          %1109 = vmatprep.subr.mxu0 0.0
          %1110 = vmatpush2.msra.mxu0 0.0
          %1111 = vmatprep.subr.mxu0 0.0
          %1112 = vmatpush2.msra.mxu0 0.0
          %1113 = vmatprep.subr.mxu0 0.0
          %1114 = vmatpush2.msra.mxu0 0.0
          %1115 = vmatprep.subr.mxu0 0.0
          %1116 = vmatpush2.msra.mxu0 0.0
          %1117 = vmatprep.subr.mxu0 0.0
          %1118 = vmatpush2.msra.mxu0 0.0
          %1119 = vmatprep.mubr.f32.mxu0 0.0
          %1120 = vmatmul.mubr.f32.gmra.mxu0 %v1053
          %v1121 = vpop.f32.mrf.mxu0
          %v1122 = vadd.f32 %v1051, %v1121
          %v1123 = vpop.f32.mrf.mxu0
          %1124 = vdwg.mxu0
          %vm1125 = vcmask 254976
          %v1126 = vsel %vm1125, %v1122, 0.0
          %1127 = vadd.xlane.f32.xlu0 %v1126
          %v1128 = vpop.xlane.xlu0 %1127
          %v1129 = vmul.f32 %v1128, %v923
          %v1130 = vsub.f32 %v1122, %v1129
          %v1131 = vmul.f32 %v1130, %v1130
          %v1132 = vsel %vm1125, %v1131, 0.0
          %1133 = vadd.xlane.f32.xlu0 %v1132
          %v1134 = vpop.xlane.xlu0 %1133
          %v1135 = vmul.f32 %v1134, %v923
          %v1136 = vadd.f32 %v1135, 1e-05
          %v1137 = vrsqrt.pop %v1136
          %v1138 = vmul.f32 %v1130, %v1137
          %v1139 = vlaneseq
          %v1140 = vshrl.u32 %v1139, 7
          %v1141 = vsub.s32 3, %v1140
          %v1142 = vrot.slane %v914, %v1141
          %v1143 = vmul.f32 %v1138, %v1142
          %v1144 = vlaneseq
          %v1145 = vshrl.u32 %v1144, 7
          %v1146 = vsub.s32 4, %v1145
          %v1147 = vrot.slane %v914, %v1146
          %v1148 = vadd.f32 %v1143, %v1147
          %1149 = vst.msk [vmem:[#allocation8] sm:$0x3] %vm1125, %v1148
        $region60: #{tpu_custom_call.1} parent=47 // pred_fallthru
          _
        // Predicated region
        $region61: #{tpu_custom_call.1} parent=47 // pred_check
          %p1150 = pneg %p187
        $region62: #{tpu_custom_call.1} parent=47 // pred_check_branch
          %1152 = sbr.rel (%p1150) target = $region64
        $region63: #{tpu_custom_call.1} parent=47 // pred_region
          %s1154 = ssub.s32 256, 256
          %1155 = vsyncadd [#allocation7], %s1154
          %s1156 = sshll.u32 [#allocation6], 4
          %s1157 = int_to_ptr.vmem [resolvable:$true] %s1156
          %1162 = dma.vmem_to_hbm [thread:$0]  %s1157, 256, %s7, [#allocation7], 128, 128, 8
        $region64: #{tpu_custom_call.1} parent=47 // pred_fallthru
          _
        // Predicated region
        $region65: #{tpu_custom_call.1} parent=47 // pred_check
          %p1163 = pneg %p208
        $region66: #{tpu_custom_call.1} parent=47 // pred_check_branch
          %1165 = sbr.rel (%p1163) target = $region68
        $region67: #{tpu_custom_call.1} parent=47 // pred_region
          %s1167 = ssub.s32 32, 32
          %1168 = vsyncadd [#allocation9], %s1167
          %s1170 = sshll.u32 [#allocation8], 4
          %s1171 = int_to_ptr.vmem [resolvable:$true] %s1170
          %1173 = dma.vmem_to_hbm [thread:$0]  %s1171, 32, %s8, [#allocation9]
        $region68: #{tpu_custom_call.1} parent=47 // pred_fallthru
          _
        // Predicated region
        $region69: #{tpu_custom_call.1} parent=47 // pred_check
          %p1174 = pneg %p187
        $region70: #{tpu_custom_call.1} parent=47 // pred_check_branch
          %1176 = sbr.rel (%p1174) target = $region72
        $region71: #{tpu_custom_call.1} parent=47 // pred_region
          %1177 = dma.done [#allocation7], 256
        $region72: #{tpu_custom_call.1} parent=47 // pred_fallthru
          _
        // Predicated region
        $region73: #{tpu_custom_call.1} parent=47 // pred_check
          %p1178 = pneg %p208
        $region74: #{tpu_custom_call.1} parent=47 // pred_check_branch
          %1180 = sbr.rel (%p1178) target = $region76
        $region75: #{tpu_custom_call.1} parent=47 // pred_region
          %1181 = dma.done [#allocation9], 32
        $region76: #{tpu_custom_call.1} parent=47 // pred_fallthru
          _
      $region48: #{tpu_custom_call.1} parent=5 // pred_fallthru
        _
      %p1182 = scmp.le.s32.totalorder 2, %s17
      // Predicated region
      $region77: #{tpu_custom_call.1} parent=5 // pred_check
        %p1183 = pneg %p1182
      $region78: #{tpu_custom_call.1} parent=5 // pred_check_branch
        %1185 = sbr.rel (%p1183) target = $region80
      $region79: #{tpu_custom_call.1} parent=5 // pred_region
        %s1186 = ssub.s32 %s17, 2
      $region80: #{tpu_custom_call.1} parent=5 // pred_fallthru
        _
    $region6: #{tpu_custom_call.1} parent=1 // loop_footer
      %s21 = sadd.s32 1, %s17
    $region7: #{tpu_custom_call.1} parent=1 // loop_footer_branch
      %16 = sbr.rel target = $region3
    $region8: #{tpu_custom_call.1} parent=1 // loop_exit
      _
    %1187 = vsyncpa [#allocation7], 1
    %s1188 = scalar_lea.sflag [#allocation7], 1
    %1189 = vsyncpa %s1188, 1
    %1190 = vsyncpa [#allocation9], 1

</llo_original>
